<compile_context>
chip_gen: v5e
topology: v5e:2x2
jax: 0.10.0
libtpu: 0.0.40
codegen_flags: <defaults>
</compile_context>

<pallas_src>
import math
import functools

import jax
import jax.numpy as jnp
from jax import lax
from jax.experimental import pallas as pl
from jax.experimental.pallas import tpu as pltpu


_DN_LAST = (((1,), (1,)), ((), ()))   # contract last dim of both operands

# Rows of the packed vector table built by prepare_params().
_SA_BQK, _SA_BV, _SA_BO = 0, 1, 2
_CA_BQ, _CA_BK, _CA_BV, _CA_BO = 3, 4, 5, 6
_L1_B, _L2_B = 7, 8
_N1_W, _N1_B, _N2_W, _N2_B, _N3_W, _N3_B = 9, 10, 11, 12, 13, 14
_NUM_VEC = 15

# Slots of the stacked (6, E, E) weight tensor.
_SA_WV, _SA_WO, _CA_WQ, _CA_WK, _CA_WV, _CA_WO = range(6)


# ----------------------------------- kernel -----------------------------------

def decoder_layer_kernel(nhead,
                         tgt_ref, mem_ref, qpos_ref, pos_ref,
                         wqk_ref, wstk_ref, l1w_ref, l2w_ref, vec_ref,
                         out_ref, ctx_ref):
    # Per grid step (one batch element): tgt_ref/qpos_ref: (T, E),
    # mem_ref/pos_ref: (S, E). ctx_ref: (T, E) f32 VMEM scratch.
    T, E = tgt_ref.shape
    S = mem_ref.shape[0]
    F = l1w_ref.shape[1]
    H = nhead
    hd = E // H
    scale = 1.0 / math.sqrt(hd)
    bf16 = jnp.bfloat16

    def vec(i, w):
        # Static slice of the packed vector table -> (1, w) f32, broadcasts
        # cleanly against (rows, w) activations.
        return vec_ref[i:i + 1, :w]

    def layer_norm(x, wi, bi, eps=1e-5):
        mu = jnp.mean(x, axis=-1, keepdims=True)
        xc = x - mu
        var = jnp.mean(xc * xc, axis=-1, keepdims=True)
        return xc * lax.rsqrt(var + eps) * vec(wi, E) + vec(bi, E)

    def attn_heads(q, k, v, wo, bo):
        # q: (T, E) f32; k, v: (L, E) f32; wo: (E, E) bf16; bo: (1, E) f32.
        # Per-head context lands in its lane slice of ctx_ref, then a single
        # K=E out-projection (full MXU depth) produces the attention output.
        qb = (q * scale).astype(bf16)
        kb = k.astype(bf16)
        vb = v.astype(bf16)
        # TODO(synk): for large H, switch to einsum('qhd,khd->hqk') scoring or
        # a fori_loop so live ranges stay bounded; H=4 static unroll is fine.
        for h in range(H):
            sl = slice(h * hd, (h + 1) * hd)
            s = lax.dot_general(qb[:, sl], kb[:, sl], _DN_LAST,
                                preferred_element_type=jnp.float32)
            s = s - jnp.max(s, axis=-1, keepdims=True)
            e = jnp.exp(s)                                   # f32 softmax math
            p = e * pl.reciprocal(jnp.sum(e, axis=-1, keepdims=True), approx=True)
            ctx_ref[:, sl] = jnp.dot(p.astype(bf16), vb[:, sl],
                                     preferred_element_type=jnp.float32)
        return jnp.dot(ctx_ref[...].astype(bf16), wo,
                       preferred_element_type=jnp.float32) + bo

    tgt = tgt_ref[...].astype(jnp.float32)
    qpos = qpos_ref[...].astype(jnp.float32)
    mem = mem_ref[...].astype(jnp.float32)
    pos = pos_ref[...].astype(jnp.float32)

    wqk = wqk_ref[...]                                       # (E, 2E) bf16
    sa_wv, sa_wo = wstk_ref[_SA_WV], wstk_ref[_SA_WO]        # (E, E) bf16 each
    ca_wq, ca_wk = wstk_ref[_CA_WQ], wstk_ref[_CA_WK]
    ca_wv, ca_wo = wstk_ref[_CA_WV], wstk_ref[_CA_WO]

    # ---- self-attention: q = k = tgt + query_pos, v = tgt (fused QK proj) ----
    qk_in = (tgt + qpos).astype(bf16)
    qk = jnp.dot(qk_in, wqk, preferred_element_type=jnp.float32) + vec(_SA_BQK, 2 * E)
    v = jnp.dot(tgt.astype(bf16), sa_wv,
                preferred_element_type=jnp.float32) + vec(_SA_BV, E)
    ctx = attn_heads(qk[:, :E], qk[:, E:], v, sa_wo, vec(_SA_BO, E))
    tgt = layer_norm(tgt + ctx, _N1_W, _N1_B)

    # ---- cross-attention: q = tgt + query_pos, k = memory + pos, v = memory --
    q = jnp.dot((tgt + qpos).astype(bf16), ca_wq,
                preferred_element_type=jnp.float32) + vec(_CA_BQ, E)
    k = jnp.dot((mem + pos).astype(bf16), ca_wk,
                preferred_element_type=jnp.float32) + vec(_CA_BK, E)
    v = jnp.dot(mem.astype(bf16), ca_wv,
                preferred_element_type=jnp.float32) + vec(_CA_BV, E)
    ctx = attn_heads(q, k, v, ca_wo, vec(_CA_BO, E))
    tgt = layer_norm(tgt + ctx, _N2_W, _N2_B)

    # ---- feed-forward: linear1 -> gelu(exact erf) -> linear2 ----
    h1 = jnp.dot(tgt.astype(bf16), l1w_ref[...],
                 preferred_element_type=jnp.float32) + vec(_L1_B, F)
    h1 = 0.5 * h1 * (1.0 + lax.erf(h1 * (1.0 / math.sqrt(2.0))))
    h2 = jnp.dot(h1.astype(bf16), l2w_ref[...],
                 preferred_element_type=jnp.float32) + vec(_L2_B, E)
    tgt = layer_norm(tgt + h2, _N3_W, _N3_B)

    out_ref[...] = tgt.astype(out_ref.dtype)


# -------------------------- one-time parameter prep ----------------------------

def prepare_params(params, dtype=jnp.bfloat16):
    """Host-side re-layout of the PyTorch-convention parameters.

    Call ONCE at model init (hoisted out of the per-call path). Every weight
    matrix is pre-transposed to (in, out) layout and cast to bf16, the
    self-attention Q/K projections are fused into a single (E, 2E) matrix,
    the six (E, E) matrices are stacked, and all 1-D bias / LayerNorm vectors
    are packed into one f32 table so the kernel sees 5 parameter tensors.
    """
    E = params['sa_out_w'].shape[0]
    F = params['l1_w'].shape[0]
    saw, sab = params['sa_in_w'], params['sa_in_b']
    caw, cab = params['ca_in_w'], params['ca_in_b']

    wqk = jnp.transpose(saw[:2 * E, :]).astype(dtype)          # (E, 2E) fused Q|K
    wstack = jnp.stack([
        jnp.transpose(saw[2 * E:, :]),                         # sa Wv
        jnp.transpose(params['sa_out_w']),                     # sa Wo
        jnp.transpose(caw[:E, :]),                             # ca Wq
        jnp.transpose(caw[E:2 * E, :]),                        # ca Wk
        jnp.transpose(caw[2 * E:, :]),                         # ca Wv
        jnp.transpose(params['ca_out_w']),                     # ca Wo
    ]).astype(dtype)                                           # (6, E, E)
    l1w = jnp.transpose(params['l1_w']).astype(dtype)          # (E, F)
    l2w = jnp.transpose(params['l2_w']).astype(dtype)          # (F, E)

    wmax = max(2 * E, F)

    def row(v):
        v = jnp.asarray(v, jnp.float32).reshape(-1)
        return jnp.pad(v, (0, wmax - v.shape[0]))

    vecs = jnp.stack([
        row(sab[:, :2 * E]), row(sab[:, 2 * E:]), row(params['sa_out_b']),
        row(cab[:, :E]), row(cab[:, E:2 * E]), row(cab[:, 2 * E:]),
        row(params['ca_out_b']),
        row(params['l1_b']), row(params['l2_b']),
        row(params['n1_w']), row(params['n1_b']),
        row(params['n2_w']), row(params['n2_b']),
        row(params['n3_w']), row(params['n3_b']),
    ])                                                         # (15, wmax) f32

    return dict(wqk=wqk, wstack=wstack, l1w=l1w, l2w=l2w, vecs=vecs)


# ---------------------------------- wrapper ------------------------------------

def transformer_decoder_layer(tgt, memory, prep, query_pos=None, pos=None, *, nhead):
    T, B, E = tgt.shape
    S = memory.shape[0]
    assert E % nhead == 0, "d_model must be divisible by nhead"
    if query_pos is None:
        query_pos = jnp.zeros_like(tgt)
    if pos is None:
        pos = jnp.zeros_like(memory)

    # Batch-major slabs: each grid step gets a dense (L, E) tile, no in-kernel
    # relayout. (Cheap XLA transposes; free relative to the layer itself.)
    tgt_b = jnp.transpose(tgt, (1, 0, 2))
    qpos_b = jnp.transpose(query_pos, (1, 0, 2))
    mem_b = jnp.transpose(memory, (1, 0, 2))
    pos_b = jnp.transpose(pos, (1, 0, 2))

    F = prep['l1w'].shape[1]
    NV, WV = prep['vecs'].shape

    out_b = pl.pallas_call(
        functools.partial(decoder_layer_kernel, nhead),
        out_shape=jax.ShapeDtypeStruct((B, T, E), tgt.dtype),
        grid=(B,),
        in_specs=[
            pl.BlockSpec((None, T, E), lambda b: (b, 0, 0)),   # tgt
            pl.BlockSpec((None, S, E), lambda b: (b, 0, 0)),   # memory
            pl.BlockSpec((None, T, E), lambda b: (b, 0, 0)),   # query_pos
            pl.BlockSpec((None, S, E), lambda b: (b, 0, 0)),   # pos
            pl.BlockSpec((E, 2 * E), lambda b: (0, 0)),        # fused Wqk
            pl.BlockSpec((6, E, E), lambda b: (0, 0, 0)),      # stacked (E,E) weights
            pl.BlockSpec((E, F), lambda b: (0, 0)),            # linear1 W
            pl.BlockSpec((F, E), lambda b: (0, 0)),            # linear2 W
            pl.BlockSpec((NV, WV), lambda b: (0, 0)),          # packed bias/LN vectors
        ],
        out_specs=pl.BlockSpec((None, T, E), lambda b: (b, 0, 0)),
        scratch_shapes=[pltpu.VMEM((T, E), jnp.float32)],      # per-head ctx assembly
        compiler_params=pltpu.CompilerParams(
            dimension_semantics=("parallel",)),                # v7x: shard over 2 TCs
    )(tgt_b, mem_b, qpos_b, pos_b,
      prep['wqk'], prep['wstack'], prep['l1w'], prep['l2w'], prep['vecs'])

    return jnp.transpose(out_b, (1, 0, 2))


# ------------------------- pure-JAX reference (cross-check) --------------------

def reference(tgt, memory, params, query_pos, pos, nhead):
    E = tgt.shape[-1]
    hd = E // nhead
    scale = 1.0 / math.sqrt(hd)

    def ln(x, w, b, eps=1e-5):
        mu = jnp.mean(x, -1, keepdims=True)
        xc = x - mu
        var = jnp.mean(xc * xc, -1, keepdims=True)
        return xc * lax.rsqrt(var + eps) * w + b

    def mha(q_in, k_in, v_in, in_w, in_b, out_w, out_b):
        q = q_in @ in_w[:E].T + in_b[:, :E]
        k = k_in @ in_w[E:2 * E].T + in_b[:, E:2 * E]
        v = v_in @ in_w[2 * E:].T + in_b[:, 2 * E:]
        heads = []
        for h in range(nhead):
            sl = slice(h * hd, (h + 1) * hd)
            s = (q[:, sl] * scale) @ k[:, sl].T
            p = jax.nn.softmax(s, axis=-1)
            heads.append(p @ v[:, sl])
        a = jnp.concatenate(heads, axis=-1)
        return a @ out_w.T + out_b

    def f(t, m, qp, ps):
        qk = t + qp
        t2 = mha(qk, qk, t, params['sa_in_w'], params['sa_in_b'],
                 params['sa_out_w'], params['sa_out_b'])
        t = ln(t + t2, params['n1_w'], params['n1_b'])
        t2 = mha(t + qp, m + ps, m, params['ca_in_w'], params['ca_in_b'],
                 params['ca_out_w'], params['ca_out_b'])
        t = ln(t + t2, params['n2_w'], params['n2_b'])
        h = t @ params['l1_w'].T + params['l1_b']
        h = 0.5 * h * (1.0 + lax.erf(h * (1.0 / math.sqrt(2.0))))
        t2 = h @ params['l2_w'].T + params['l2_b']
        return ln(t + t2, params['n3_w'], params['n3_b'])

    return jax.vmap(f, in_axes=(1, 1, 1, 1), out_axes=1)(tgt, memory, query_pos, pos)


# ---------------------------------- params -------------------------------------

def init_params(key, d_model, dim_feedforward):
    ks = jax.random.split(key, 12)
    s = 0.05
    f32 = jnp.float32
    p = {
        'sa_in_w':  jax.random.normal(ks[0], (3 * d_model, d_model), f32) * s,
        'sa_in_b':  jax.random.normal(ks[1], (1, 3 * d_model), f32) * s,
        'sa_out_w': jax.random.normal(ks[2], (d_model, d_model), f32) * s,
        'sa_out_b': jax.random.normal(ks[3], (1, d_model), f32) * s,
        'ca_in_w':  jax.random.normal(ks[4], (3 * d_model, d_model), f32) * s,
        'ca_in_b':  jax.random.normal(ks[5], (1, 3 * d_model), f32) * s,
        'ca_out_w': jax.random.normal(ks[6], (d_model, d_model), f32) * s,
        'ca_out_b': jax.random.normal(ks[7], (1, d_model), f32) * s,
        'l1_w':     jax.random.normal(ks[8], (dim_feedforward, d_model), f32) * s,
        'l1_b':     jax.random.normal(ks[9], (1, dim_feedforward), f32) * s,
        'l2_w':     jax.random.normal(ks[10], (d_model, dim_feedforward), f32) * s,
        'l2_b':     jax.random.normal(ks[11], (1, d_model), f32) * s,
    }
    for i in (1, 2, 3):
        p[f'n{i}_w'] = jnp.ones((1, d_model), f32)
        p[f'n{i}_b'] = jnp.zeros((1, d_model), f32)
    return p


# ----------------------------------- main ---------------------------------------

if __name__ == "__main__":
    d_model, nhead, dim_feedforward = 32, 4, 64
    T, S, B = 8, 16, 2

    key = jax.random.PRNGKey(0)
    k_tgt, k_mem, k_qp, k_pos, k_par = jax.random.split(key, 5)

    tgt = jax.random.normal(k_tgt, (T, B, d_model), jnp.float32)
    memory = jax.random.normal(k_mem, (S, B, d_model), jnp.float32)
    query_pos = jax.random.normal(k_qp, (T, B, d_model), jnp.float32)
    pos = jax.random.normal(k_pos, (S, B, d_model), jnp.float32)
    params = init_params(k_par, d_model, dim_feedforward)

    # Weight prep is hoisted: done once at "model init", reused every call.
    prep = prepare_params(params)

    out = transformer_decoder_layer(tgt, memory, prep,
                                    query_pos=query_pos, pos=pos, nhead=nhead)
    out = jax.block_until_ready(out)

    ref = jax.block_until_ready(reference(tgt, memory, params, query_pos, pos, nhead))
    assert out.shape == (T, B, d_model)
    # Relaxed tolerance: matmul operands are bf16 (f32 accumulate) and the
    # softmax denominator uses the EUP approximate reciprocal; expected error
    # is a few 1e-3 at these scales, so 5e-2 still catches real bugs.
    assert jnp.allclose(out, ref, atol=5e-2, rtol=5e-2), "mismatch vs JAX reference"

    print("KERNEL_OK")
</pallas_src>

<mosaic_0001>
module attributes {stable_mosaic.version = 11 : i64} {
  func.func @decoder_layer_kernel(%arg0: i32, %arg1: memref<1x8x32xf32, #tpu.memory_space<vmem>>, %arg2: memref<1x16x32xf32, #tpu.memory_space<vmem>>, %arg3: memref<1x8x32xf32, #tpu.memory_space<vmem>>, %arg4: memref<1x16x32xf32, #tpu.memory_space<vmem>>, %arg5: memref<32x64xbf16, #tpu.memory_space<vmem>>, %arg6: memref<6x32x32xbf16, #tpu.memory_space<vmem>>, %arg7: memref<32x64xbf16, #tpu.memory_space<vmem>>, %arg8: memref<64x32xbf16, #tpu.memory_space<vmem>>, %arg9: memref<15x64xf32, #tpu.memory_space<vmem>>, %arg10: memref<1x8x32xf32, #tpu.memory_space<vmem>>, %arg11: memref<8x32xf32, #tpu.memory_space<vmem>>) attributes {dimension_semantics = [#tpu.dimension_semantics<parallel>], iteration_bounds = array<i64: 2>, scalar_prefetch = 0 : i64, scratch_operands = 1 : i64, tpu.core_type = #tpu.core_type<tc>, window_params = [{transform_indices = @transform_0, window_bounds = array<i64: 1, 8, 32>}, {transform_indices = @transform_1, window_bounds = array<i64: 1, 16, 32>}, {transform_indices = @transform_2, window_bounds = array<i64: 1, 8, 32>}, {transform_indices = @transform_3, window_bounds = array<i64: 1, 16, 32>}, {pipeline_mode = #tpu.pipeline_mode<synchronous>, transform_indices = @transform_4, window_bounds = array<i64: 32, 64>}, {pipeline_mode = #tpu.pipeline_mode<synchronous>, transform_indices = @transform_5, window_bounds = array<i64: 6, 32, 32>}, {pipeline_mode = #tpu.pipeline_mode<synchronous>, transform_indices = @transform_6, window_bounds = array<i64: 32, 64>}, {pipeline_mode = #tpu.pipeline_mode<synchronous>, transform_indices = @transform_7, window_bounds = array<i64: 64, 32>}, {pipeline_mode = #tpu.pipeline_mode<synchronous>, transform_indices = @transform_8, window_bounds = array<i64: 15, 64>}, {transform_indices = @transform_9, window_bounds = array<i64: 1, 8, 32>}]} {
    %c0 = arith.constant 0 : index
    %c0_0 = arith.constant 0 : index
    %c0_1 = arith.constant 0 : index
    %0 = vector.load %arg1[%c0, %c0_0, %c0_1] : memref<1x8x32xf32, #tpu.memory_space<vmem>>, vector<1x8x32xf32>
    %1 = vector.shape_cast %0 : vector<1x8x32xf32> to vector<8x32xf32>
    %c0_2 = arith.constant 0 : index
    %c0_3 = arith.constant 0 : index
    %c0_4 = arith.constant 0 : index
    %2 = vector.load %arg3[%c0_2, %c0_3, %c0_4] : memref<1x8x32xf32, #tpu.memory_space<vmem>>, vector<1x8x32xf32>
    %3 = vector.shape_cast %2 : vector<1x8x32xf32> to vector<8x32xf32>
    %c0_5 = arith.constant 0 : index
    %c0_6 = arith.constant 0 : index
    %c0_7 = arith.constant 0 : index
    %4 = vector.load %arg2[%c0_5, %c0_6, %c0_7] : memref<1x16x32xf32, #tpu.memory_space<vmem>>, vector<1x16x32xf32>
    %5 = vector.shape_cast %4 : vector<1x16x32xf32> to vector<16x32xf32>
    %c0_8 = arith.constant 0 : index
    %c0_9 = arith.constant 0 : index
    %c0_10 = arith.constant 0 : index
    %6 = vector.load %arg4[%c0_8, %c0_9, %c0_10] : memref<1x16x32xf32, #tpu.memory_space<vmem>>, vector<1x16x32xf32>
    %7 = vector.shape_cast %6 : vector<1x16x32xf32> to vector<16x32xf32>
    %c0_11 = arith.constant 0 : index
    %c0_12 = arith.constant 0 : index
    %8 = vector.load %arg5[%c0_11, %c0_12] : memref<32x64xbf16, #tpu.memory_space<vmem>>, vector<32x64xbf16>
    %c0_13 = arith.constant 0 : index
    %c0_14 = arith.constant 0 : index
    %c0_15 = arith.constant 0 : index
    %9 = vector.load %arg6[%c0_13, %c0_14, %c0_15] : memref<6x32x32xbf16, #tpu.memory_space<vmem>>, vector<1x32x32xbf16>
    %10 = vector.shape_cast %9 : vector<1x32x32xbf16> to vector<32x32xbf16>
    %c1 = arith.constant 1 : index
    %c0_16 = arith.constant 0 : index
    %c0_17 = arith.constant 0 : index
    %11 = vector.load %arg6[%c1, %c0_16, %c0_17] : memref<6x32x32xbf16, #tpu.memory_space<vmem>>, vector<1x32x32xbf16>
    %12 = vector.shape_cast %11 : vector<1x32x32xbf16> to vector<32x32xbf16>
    %c2 = arith.constant 2 : index
    %c0_18 = arith.constant 0 : index
    %c0_19 = arith.constant 0 : index
    %13 = vector.load %arg6[%c2, %c0_18, %c0_19] : memref<6x32x32xbf16, #tpu.memory_space<vmem>>, vector<1x32x32xbf16>
    %14 = vector.shape_cast %13 : vector<1x32x32xbf16> to vector<32x32xbf16>
    %c3 = arith.constant 3 : index
    %c0_20 = arith.constant 0 : index
    %c0_21 = arith.constant 0 : index
    %15 = vector.load %arg6[%c3, %c0_20, %c0_21] : memref<6x32x32xbf16, #tpu.memory_space<vmem>>, vector<1x32x32xbf16>
    %16 = vector.shape_cast %15 : vector<1x32x32xbf16> to vector<32x32xbf16>
    %c4 = arith.constant 4 : index
    %c0_22 = arith.constant 0 : index
    %c0_23 = arith.constant 0 : index
    %17 = vector.load %arg6[%c4, %c0_22, %c0_23] : memref<6x32x32xbf16, #tpu.memory_space<vmem>>, vector<1x32x32xbf16>
    %18 = vector.shape_cast %17 : vector<1x32x32xbf16> to vector<32x32xbf16>
    %c5 = arith.constant 5 : index
    %c0_24 = arith.constant 0 : index
    %c0_25 = arith.constant 0 : index
    %19 = vector.load %arg6[%c5, %c0_24, %c0_25] : memref<6x32x32xbf16, #tpu.memory_space<vmem>>, vector<1x32x32xbf16>
    %20 = vector.shape_cast %19 : vector<1x32x32xbf16> to vector<32x32xbf16>
    %21 = arith.addf %1, %3 : vector<8x32xf32>
    %22 = arith.truncf %21 : vector<8x32xf32> to vector<8x32xbf16>
    %cst = arith.constant dense<0.000000e+00> : vector<8x64xf32>
    %23 = tpu.matmul %22, %8, %cst {dimension_numbers = #tpu.dot_dimension_numbers<[1], [0], [0], [1], [0, 0, 1, 1], [], []>} : vector<8x32xbf16>, vector<32x64xbf16>, vector<8x64xf32> -> vector<8x64xf32>
    %c0_26 = arith.constant 0 : index
    %c0_27 = arith.constant 0 : index
    %24 = vector.load %arg9[%c0_26, %c0_27] : memref<15x64xf32, #tpu.memory_space<vmem>>, vector<1x64xf32>
    %25 = vector.broadcast %24 : vector<1x64xf32> to vector<8x64xf32>
    %26 = arith.addf %23, %25 : vector<8x64xf32>
    %27 = arith.truncf %1 : vector<8x32xf32> to vector<8x32xbf16>
    %cst_28 = arith.constant dense<0.000000e+00> : vector<8x32xf32>
    %28 = tpu.matmul %27, %10, %cst_28 {dimension_numbers = #tpu.dot_dimension_numbers<[1], [0], [0], [1], [0, 0, 1, 1], [], []>} : vector<8x32xbf16>, vector<32x32xbf16>, vector<8x32xf32> -> vector<8x32xf32>
    %c1_29 = arith.constant 1 : index
    %c0_30 = arith.constant 0 : index
    %29 = vector.load %arg9[%c1_29, %c0_30] : memref<15x64xf32, #tpu.memory_space<vmem>>, vector<1x32xf32>
    %30 = vector.broadcast %29 : vector<1x32xf32> to vector<8x32xf32>
    %31 = arith.addf %28, %30 : vector<8x32xf32>
    %32 = vector.extract_strided_slice %26 {offsets = [0, 0], sizes = [8, 32], strides = [1, 1]} : vector<8x64xf32> to vector<8x32xf32>
    %33 = vector.extract_strided_slice %26 {offsets = [0, 32], sizes = [8, 32], strides = [1, 1]} : vector<8x64xf32> to vector<8x32xf32>
    %c2_31 = arith.constant 2 : index
    %c0_32 = arith.constant 0 : index
    %34 = vector.load %arg9[%c2_31, %c0_32] : memref<15x64xf32, #tpu.memory_space<vmem>>, vector<1x32xf32>
    %cst_33 = arith.constant 0.353553385 : f32
    %35 = vector.broadcast %cst_33 : f32 to vector<8x32xf32>
    %36 = arith.mulf %32, %35 : vector<8x32xf32>
    %37 = arith.truncf %36 : vector<8x32xf32> to vector<8x32xbf16>
    %38 = arith.truncf %33 : vector<8x32xf32> to vector<8x32xbf16>
    %39 = arith.truncf %31 : vector<8x32xf32> to vector<8x32xbf16>
    %40 = vector.extract_strided_slice %37 {offsets = [0, 0], sizes = [8, 8], strides = [1, 1]} : vector<8x32xbf16> to vector<8x8xbf16>
    %41 = vector.extract_strided_slice %38 {offsets = [0, 0], sizes = [8, 8], strides = [1, 1]} : vector<8x32xbf16> to vector<8x8xbf16>
    %cst_34 = arith.constant dense<0.000000e+00> : vector<8x8xf32>
    %42 = tpu.matmul %40, %41, %cst_34 {dimension_numbers = #tpu.dot_dimension_numbers<[1], [1], [0], [0], [0, 0, 1, 0], [], []>} : vector<8x8xbf16>, vector<8x8xbf16>, vector<8x8xf32> -> vector<8x8xf32>
    %cst_35 = arith.constant dense<0xFF800000> : vector<8xf32>
    %43 = vector.multi_reduction <maximumf>, %42, %cst_35 [1] : vector<8x8xf32> to vector<8xf32>
    %44 = vector.shape_cast %43 : vector<8xf32> to vector<8x1xf32>
    %45 = vector.broadcast %44 : vector<8x1xf32> to vector<8x8xf32>
    %46 = arith.subf %42, %45 : vector<8x8xf32>
    %47 = math.exp %46 : vector<8x8xf32>
    %cst_36 = arith.constant dense<0.000000e+00> : vector<8xf32>
    %48 = vector.multi_reduction <add>, %47, %cst_36 [1] : vector<8x8xf32> to vector<8xf32>
    %49 = vector.shape_cast %48 : vector<8xf32> to vector<8x1xf32>
    %50 = tpu.reciprocal %49 {approx = true} : vector<8x1xf32> -> vector<8x1xf32>
    %51 = vector.broadcast %50 : vector<8x1xf32> to vector<8x8xf32>
    %52 = arith.mulf %47, %51 : vector<8x8xf32>
    %53 = arith.truncf %52 : vector<8x8xf32> to vector<8x8xbf16>
    %54 = vector.extract_strided_slice %39 {offsets = [0, 0], sizes = [8, 8], strides = [1, 1]} : vector<8x32xbf16> to vector<8x8xbf16>
    %cst_37 = arith.constant dense<0.000000e+00> : vector<8x8xf32>
    %55 = tpu.matmul %53, %54, %cst_37 {dimension_numbers = #tpu.dot_dimension_numbers<[1], [0], [0], [1], [0, 0, 1, 1], [], []>} : vector<8x8xbf16>, vector<8x8xbf16>, vector<8x8xf32> -> vector<8x8xf32>
    %c0_38 = arith.constant 0 : index
    %c0_39 = arith.constant 0 : index
    %56 = vector.load %arg11[%c0_38, %c0_39] : memref<8x32xf32, #tpu.memory_space<vmem>>, vector<8x8xf32>
    tpu.vector_store %arg11[%c0_38, %c0_39], %55 {strides = array<i32>} : memref<8x32xf32, #tpu.memory_space<vmem>>, vector<8x8xf32>,
    %57 = vector.extract_strided_slice %37 {offsets = [0, 8], sizes = [8, 8], strides = [1, 1]} : vector<8x32xbf16> to vector<8x8xbf16>
    %58 = vector.extract_strided_slice %38 {offsets = [0, 8], sizes = [8, 8], strides = [1, 1]} : vector<8x32xbf16> to vector<8x8xbf16>
    %cst_40 = arith.constant dense<0.000000e+00> : vector<8x8xf32>
    %59 = tpu.matmul %57, %58, %cst_40 {dimension_numbers = #tpu.dot_dimension_numbers<[1], [1], [0], [0], [0, 0, 1, 0], [], []>} : vector<8x8xbf16>, vector<8x8xbf16>, vector<8x8xf32> -> vector<8x8xf32>
    %cst_41 = arith.constant dense<0xFF800000> : vector<8xf32>
    %60 = vector.multi_reduction <maximumf>, %59, %cst_41 [1] : vector<8x8xf32> to vector<8xf32>
    %61 = vector.shape_cast %60 : vector<8xf32> to vector<8x1xf32>
    %62 = vector.broadcast %61 : vector<8x1xf32> to vector<8x8xf32>
    %63 = arith.subf %59, %62 : vector<8x8xf32>
    %64 = math.exp %63 : vector<8x8xf32>
    %cst_42 = arith.constant dense<0.000000e+00> : vector<8xf32>
    %65 = vector.multi_reduction <add>, %64, %cst_42 [1] : vector<8x8xf32> to vector<8xf32>
    %66 = vector.shape_cast %65 : vector<8xf32> to vector<8x1xf32>
    %67 = tpu.reciprocal %66 {approx = true} : vector<8x1xf32> -> vector<8x1xf32>
    %68 = vector.broadcast %67 : vector<8x1xf32> to vector<8x8xf32>
    %69 = arith.mulf %64, %68 : vector<8x8xf32>
    %70 = arith.truncf %69 : vector<8x8xf32> to vector<8x8xbf16>
    %71 = vector.extract_strided_slice %39 {offsets = [0, 8], sizes = [8, 8], strides = [1, 1]} : vector<8x32xbf16> to vector<8x8xbf16>
    %cst_43 = arith.constant dense<0.000000e+00> : vector<8x8xf32>
    %72 = tpu.matmul %70, %71, %cst_43 {dimension_numbers = #tpu.dot_dimension_numbers<[1], [0], [0], [1], [0, 0, 1, 1], [], []>} : vector<8x8xbf16>, vector<8x8xbf16>, vector<8x8xf32> -> vector<8x8xf32>
    %c0_44 = arith.constant 0 : index
    %c8 = arith.constant 8 : index
    %73 = vector.load %arg11[%c0_44, %c8] : memref<8x32xf32, #tpu.memory_space<vmem>>, vector<8x8xf32>
    tpu.vector_store %arg11[%c0_44, %c8], %72 {strides = array<i32>} : memref<8x32xf32, #tpu.memory_space<vmem>>, vector<8x8xf32>,
    %74 = vector.extract_strided_slice %37 {offsets = [0, 16], sizes = [8, 8], strides = [1, 1]} : vector<8x32xbf16> to vector<8x8xbf16>
    %75 = vector.extract_strided_slice %38 {offsets = [0, 16], sizes = [8, 8], strides = [1, 1]} : vector<8x32xbf16> to vector<8x8xbf16>
    %cst_45 = arith.constant dense<0.000000e+00> : vector<8x8xf32>
    %76 = tpu.matmul %74, %75, %cst_45 {dimension_numbers = #tpu.dot_dimension_numbers<[1], [1], [0], [0], [0, 0, 1, 0], [], []>} : vector<8x8xbf16>, vector<8x8xbf16>, vector<8x8xf32> -> vector<8x8xf32>
    %cst_46 = arith.constant dense<0xFF800000> : vector<8xf32>
    %77 = vector.multi_reduction <maximumf>, %76, %cst_46 [1] : vector<8x8xf32> to vector<8xf32>
    %78 = vector.shape_cast %77 : vector<8xf32> to vector<8x1xf32>
    %79 = vector.broadcast %78 : vector<8x1xf32> to vector<8x8xf32>
    %80 = arith.subf %76, %79 : vector<8x8xf32>
    %81 = math.exp %80 : vector<8x8xf32>
    %cst_47 = arith.constant dense<0.000000e+00> : vector<8xf32>
    %82 = vector.multi_reduction <add>, %81, %cst_47 [1] : vector<8x8xf32> to vector<8xf32>
    %83 = vector.shape_cast %82 : vector<8xf32> to vector<8x1xf32>
    %84 = tpu.reciprocal %83 {approx = true} : vector<8x1xf32> -> vector<8x1xf32>
    %85 = vector.broadcast %84 : vector<8x1xf32> to vector<8x8xf32>
    %86 = arith.mulf %81, %85 : vector<8x8xf32>
    %87 = arith.truncf %86 : vector<8x8xf32> to vector<8x8xbf16>
    %88 = vector.extract_strided_slice %39 {offsets = [0, 16], sizes = [8, 8], strides = [1, 1]} : vector<8x32xbf16> to vector<8x8xbf16>
    %cst_48 = arith.constant dense<0.000000e+00> : vector<8x8xf32>
    %89 = tpu.matmul %87, %88, %cst_48 {dimension_numbers = #tpu.dot_dimension_numbers<[1], [0], [0], [1], [0, 0, 1, 1], [], []>} : vector<8x8xbf16>, vector<8x8xbf16>, vector<8x8xf32> -> vector<8x8xf32>
    %c0_49 = arith.constant 0 : index
    %c16 = arith.constant 16 : index
    %90 = vector.load %arg11[%c0_49, %c16] : memref<8x32xf32, #tpu.memory_space<vmem>>, vector<8x8xf32>
    tpu.vector_store %arg11[%c0_49, %c16], %89 {strides = array<i32>} : memref<8x32xf32, #tpu.memory_space<vmem>>, vector<8x8xf32>,
    %91 = vector.extract_strided_slice %37 {offsets = [0, 24], sizes = [8, 8], strides = [1, 1]} : vector<8x32xbf16> to vector<8x8xbf16>
    %92 = vector.extract_strided_slice %38 {offsets = [0, 24], sizes = [8, 8], strides = [1, 1]} : vector<8x32xbf16> to vector<8x8xbf16>
    %cst_50 = arith.constant dense<0.000000e+00> : vector<8x8xf32>
    %93 = tpu.matmul %91, %92, %cst_50 {dimension_numbers = #tpu.dot_dimension_numbers<[1], [1], [0], [0], [0, 0, 1, 0], [], []>} : vector<8x8xbf16>, vector<8x8xbf16>, vector<8x8xf32> -> vector<8x8xf32>
    %cst_51 = arith.constant dense<0xFF800000> : vector<8xf32>
    %94 = vector.multi_reduction <maximumf>, %93, %cst_51 [1] : vector<8x8xf32> to vector<8xf32>
    %95 = vector.shape_cast %94 : vector<8xf32> to vector<8x1xf32>
    %96 = vector.broadcast %95 : vector<8x1xf32> to vector<8x8xf32>
    %97 = arith.subf %93, %96 : vector<8x8xf32>
    %98 = math.exp %97 : vector<8x8xf32>
    %cst_52 = arith.constant dense<0.000000e+00> : vector<8xf32>
    %99 = vector.multi_reduction <add>, %98, %cst_52 [1] : vector<8x8xf32> to vector<8xf32>
    %100 = vector.shape_cast %99 : vector<8xf32> to vector<8x1xf32>
    %101 = tpu.reciprocal %100 {approx = true} : vector<8x1xf32> -> vector<8x1xf32>
    %102 = vector.broadcast %101 : vector<8x1xf32> to vector<8x8xf32>
    %103 = arith.mulf %98, %102 : vector<8x8xf32>
    %104 = arith.truncf %103 : vector<8x8xf32> to vector<8x8xbf16>
    %105 = vector.extract_strided_slice %39 {offsets = [0, 24], sizes = [8, 8], strides = [1, 1]} : vector<8x32xbf16> to vector<8x8xbf16>
    %cst_53 = arith.constant dense<0.000000e+00> : vector<8x8xf32>
    %106 = tpu.matmul %104, %105, %cst_53 {dimension_numbers = #tpu.dot_dimension_numbers<[1], [0], [0], [1], [0, 0, 1, 1], [], []>} : vector<8x8xbf16>, vector<8x8xbf16>, vector<8x8xf32> -> vector<8x8xf32>
    %c0_54 = arith.constant 0 : index
    %c24 = arith.constant 24 : index
    %107 = vector.load %arg11[%c0_54, %c24] : memref<8x32xf32, #tpu.memory_space<vmem>>, vector<8x8xf32>
    tpu.vector_store %arg11[%c0_54, %c24], %106 {strides = array<i32>} : memref<8x32xf32, #tpu.memory_space<vmem>>, vector<8x8xf32>,
    %c0_55 = arith.constant 0 : index
    %c0_56 = arith.constant 0 : index
    %108 = vector.load %arg11[%c0_55, %c0_56] : memref<8x32xf32, #tpu.memory_space<vmem>>, vector<8x32xf32>
    %109 = arith.truncf %108 : vector<8x32xf32> to vector<8x32xbf16>
    %cst_57 = arith.constant dense<0.000000e+00> : vector<8x32xf32>
    %110 = tpu.matmul %109, %12, %cst_57 {dimension_numbers = #tpu.dot_dimension_numbers<[1], [0], [0], [1], [0, 0, 1, 1], [], []>} : vector<8x32xbf16>, vector<32x32xbf16>, vector<8x32xf32> -> vector<8x32xf32>
    %111 = vector.broadcast %34 : vector<1x32xf32> to vector<8x32xf32>
    %112 = arith.addf %110, %111 : vector<8x32xf32>
    %113 = arith.addf %1, %112 : vector<8x32xf32>
    %cst_58 = arith.constant dense<0.000000e+00> : vector<8xf32>
    %114 = vector.multi_reduction <add>, %113, %cst_58 [1] : vector<8x32xf32> to vector<8xf32>
    %115 = vector.shape_cast %114 : vector<8xf32> to vector<8x1xf32>
    %cst_59 = arith.constant 3.200000e+01 : f32
    %116 = vector.broadcast %cst_59 : f32 to vector<8x1xf32>
    %117 = arith.divf %115, %116 : vector<8x1xf32>
    %118 = vector.broadcast %117 : vector<8x1xf32> to vector<8x32xf32>
    %119 = arith.subf %113, %118 : vector<8x32xf32>
    %120 = arith.mulf %119, %119 : vector<8x32xf32>
    %cst_60 = arith.constant dense<0.000000e+00> : vector<8xf32>
    %121 = vector.multi_reduction <add>, %120, %cst_60 [1] : vector<8x32xf32> to vector<8xf32>
    %122 = vector.shape_cast %121 : vector<8xf32> to vector<8x1xf32>
    %cst_61 = arith.constant 3.200000e+01 : f32
    %123 = vector.broadcast %cst_61 : f32 to vector<8x1xf32>
    %124 = arith.divf %122, %123 : vector<8x1xf32>
    %cst_62 = arith.constant 9.99999974E-6 : f32
    %125 = vector.broadcast %cst_62 : f32 to vector<8x1xf32>
    %126 = arith.addf %124, %125 : vector<8x1xf32>
    %127 = math.rsqrt %126 : vector<8x1xf32>
    %128 = vector.broadcast %127 : vector<8x1xf32> to vector<8x32xf32>
    %129 = arith.mulf %119, %128 : vector<8x32xf32>
    %c9 = arith.constant 9 : index
    %c0_63 = arith.constant 0 : index
    %130 = vector.load %arg9[%c9, %c0_63] : memref<15x64xf32, #tpu.memory_space<vmem>>, vector<1x32xf32>
    %131 = vector.broadcast %130 : vector<1x32xf32> to vector<8x32xf32>
    %132 = arith.mulf %129, %131 : vector<8x32xf32>
    %c10 = arith.constant 10 : index
    %c0_64 = arith.constant 0 : index
    %133 = vector.load %arg9[%c10, %c0_64] : memref<15x64xf32, #tpu.memory_space<vmem>>, vector<1x32xf32>
    %134 = vector.broadcast %133 : vector<1x32xf32> to vector<8x32xf32>
    %135 = arith.addf %132, %134 : vector<8x32xf32>
    %136 = arith.addf %135, %3 : vector<8x32xf32>
    %137 = arith.truncf %136 : vector<8x32xf32> to vector<8x32xbf16>
    %cst_65 = arith.constant dense<0.000000e+00> : vector<8x32xf32>
    %138 = tpu.matmul %137, %14, %cst_65 {dimension_numbers = #tpu.dot_dimension_numbers<[1], [0], [0], [1], [0, 0, 1, 1], [], []>} : vector<8x32xbf16>, vector<32x32xbf16>, vector<8x32xf32> -> vector<8x32xf32>
    %c3_66 = arith.constant 3 : index
    %c0_67 = arith.constant 0 : index
    %139 = vector.load %arg9[%c3_66, %c0_67] : memref<15x64xf32, #tpu.memory_space<vmem>>, vector<1x32xf32>
    %140 = vector.broadcast %139 : vector<1x32xf32> to vector<8x32xf32>
    %141 = arith.addf %138, %140 : vector<8x32xf32>
    %142 = arith.addf %5, %7 : vector<16x32xf32>
    %143 = arith.truncf %142 : vector<16x32xf32> to vector<16x32xbf16>
    %cst_68 = arith.constant dense<0.000000e+00> : vector<16x32xf32>
    %144 = tpu.matmul %143, %16, %cst_68 {dimension_numbers = #tpu.dot_dimension_numbers<[1], [0], [0], [1], [0, 0, 1, 1], [], []>} : vector<16x32xbf16>, vector<32x32xbf16>, vector<16x32xf32> -> vector<16x32xf32>
    %c4_69 = arith.constant 4 : index
    %c0_70 = arith.constant 0 : index
    %145 = vector.load %arg9[%c4_69, %c0_70] : memref<15x64xf32, #tpu.memory_space<vmem>>, vector<1x32xf32>
    %146 = vector.broadcast %145 : vector<1x32xf32> to vector<16x32xf32>
    %147 = arith.addf %144, %146 : vector<16x32xf32>
    %148 = arith.truncf %5 : vector<16x32xf32> to vector<16x32xbf16>
    %cst_71 = arith.constant dense<0.000000e+00> : vector<16x32xf32>
    %149 = tpu.matmul %148, %18, %cst_71 {dimension_numbers = #tpu.dot_dimension_numbers<[1], [0], [0], [1], [0, 0, 1, 1], [], []>} : vector<16x32xbf16>, vector<32x32xbf16>, vector<16x32xf32> -> vector<16x32xf32>
    %c5_72 = arith.constant 5 : index
    %c0_73 = arith.constant 0 : index
    %150 = vector.load %arg9[%c5_72, %c0_73] : memref<15x64xf32, #tpu.memory_space<vmem>>, vector<1x32xf32>
    %151 = vector.broadcast %150 : vector<1x32xf32> to vector<16x32xf32>
    %152 = arith.addf %149, %151 : vector<16x32xf32>
    %c6 = arith.constant 6 : index
    %c0_74 = arith.constant 0 : index
    %153 = vector.load %arg9[%c6, %c0_74] : memref<15x64xf32, #tpu.memory_space<vmem>>, vector<1x32xf32>
    %cst_75 = arith.constant 0.353553385 : f32
    %154 = vector.broadcast %cst_75 : f32 to vector<8x32xf32>
    %155 = arith.mulf %141, %154 : vector<8x32xf32>
    %156 = arith.truncf %155 : vector<8x32xf32> to vector<8x32xbf16>
    %157 = arith.truncf %147 : vector<16x32xf32> to vector<16x32xbf16>
    %158 = arith.truncf %152 : vector<16x32xf32> to vector<16x32xbf16>
    %159 = vector.extract_strided_slice %156 {offsets = [0, 0], sizes = [8, 8], strides = [1, 1]} : vector<8x32xbf16> to vector<8x8xbf16>
    %160 = vector.extract_strided_slice %157 {offsets = [0, 0], sizes = [16, 8], strides = [1, 1]} : vector<16x32xbf16> to vector<16x8xbf16>
    %cst_76 = arith.constant dense<0.000000e+00> : vector<8x16xf32>
    %161 = tpu.matmul %159, %160, %cst_76 {dimension_numbers = #tpu.dot_dimension_numbers<[1], [1], [0], [0], [0, 0, 1, 0], [], []>} : vector<8x8xbf16>, vector<16x8xbf16>, vector<8x16xf32> -> vector<8x16xf32>
    %cst_77 = arith.constant dense<0xFF800000> : vector<8xf32>
    %162 = vector.multi_reduction <maximumf>, %161, %cst_77 [1] : vector<8x16xf32> to vector<8xf32>
    %163 = vector.shape_cast %162 : vector<8xf32> to vector<8x1xf32>
    %164 = vector.broadcast %163 : vector<8x1xf32> to vector<8x16xf32>
    %165 = arith.subf %161, %164 : vector<8x16xf32>
    %166 = math.exp %165 : vector<8x16xf32>
    %cst_78 = arith.constant dense<0.000000e+00> : vector<8xf32>
    %167 = vector.multi_reduction <add>, %166, %cst_78 [1] : vector<8x16xf32> to vector<8xf32>
    %168 = vector.shape_cast %167 : vector<8xf32> to vector<8x1xf32>
    %169 = tpu.reciprocal %168 {approx = true} : vector<8x1xf32> -> vector<8x1xf32>
    %170 = vector.broadcast %169 : vector<8x1xf32> to vector<8x16xf32>
    %171 = arith.mulf %166, %170 : vector<8x16xf32>
    %172 = arith.truncf %171 : vector<8x16xf32> to vector<8x16xbf16>
    %173 = vector.extract_strided_slice %158 {offsets = [0, 0], sizes = [16, 8], strides = [1, 1]} : vector<16x32xbf16> to vector<16x8xbf16>
    %cst_79 = arith.constant dense<0.000000e+00> : vector<8x8xf32>
    %174 = tpu.matmul %172, %173, %cst_79 {dimension_numbers = #tpu.dot_dimension_numbers<[1], [0], [0], [1], [0, 0, 1, 1], [], []>} : vector<8x16xbf16>, vector<16x8xbf16>, vector<8x8xf32> -> vector<8x8xf32>
    %c0_80 = arith.constant 0 : index
    %c0_81 = arith.constant 0 : index
    %175 = vector.load %arg11[%c0_80, %c0_81] : memref<8x32xf32, #tpu.memory_space<vmem>>, vector<8x8xf32>
    tpu.vector_store %arg11[%c0_80, %c0_81], %174 {strides = array<i32>} : memref<8x32xf32, #tpu.memory_space<vmem>>, vector<8x8xf32>,
    %176 = vector.extract_strided_slice %156 {offsets = [0, 8], sizes = [8, 8], strides = [1, 1]} : vector<8x32xbf16> to vector<8x8xbf16>
    %177 = vector.extract_strided_slice %157 {offsets = [0, 8], sizes = [16, 8], strides = [1, 1]} : vector<16x32xbf16> to vector<16x8xbf16>
    %cst_82 = arith.constant dense<0.000000e+00> : vector<8x16xf32>
    %178 = tpu.matmul %176, %177, %cst_82 {dimension_numbers = #tpu.dot_dimension_numbers<[1], [1], [0], [0], [0, 0, 1, 0], [], []>} : vector<8x8xbf16>, vector<16x8xbf16>, vector<8x16xf32> -> vector<8x16xf32>
    %cst_83 = arith.constant dense<0xFF800000> : vector<8xf32>
    %179 = vector.multi_reduction <maximumf>, %178, %cst_83 [1] : vector<8x16xf32> to vector<8xf32>
    %180 = vector.shape_cast %179 : vector<8xf32> to vector<8x1xf32>
    %181 = vector.broadcast %180 : vector<8x1xf32> to vector<8x16xf32>
    %182 = arith.subf %178, %181 : vector<8x16xf32>
    %183 = math.exp %182 : vector<8x16xf32>
    %cst_84 = arith.constant dense<0.000000e+00> : vector<8xf32>
    %184 = vector.multi_reduction <add>, %183, %cst_84 [1] : vector<8x16xf32> to vector<8xf32>
    %185 = vector.shape_cast %184 : vector<8xf32> to vector<8x1xf32>
    %186 = tpu.reciprocal %185 {approx = true} : vector<8x1xf32> -> vector<8x1xf32>
    %187 = vector.broadcast %186 : vector<8x1xf32> to vector<8x16xf32>
    %188 = arith.mulf %183, %187 : vector<8x16xf32>
    %189 = arith.truncf %188 : vector<8x16xf32> to vector<8x16xbf16>
    %190 = vector.extract_strided_slice %158 {offsets = [0, 8], sizes = [16, 8], strides = [1, 1]} : vector<16x32xbf16> to vector<16x8xbf16>
    %cst_85 = arith.constant dense<0.000000e+00> : vector<8x8xf32>
    %191 = tpu.matmul %189, %190, %cst_85 {dimension_numbers = #tpu.dot_dimension_numbers<[1], [0], [0], [1], [0, 0, 1, 1], [], []>} : vector<8x16xbf16>, vector<16x8xbf16>, vector<8x8xf32> -> vector<8x8xf32>
    %c0_86 = arith.constant 0 : index
    %c8_87 = arith.constant 8 : index
    %192 = vector.load %arg11[%c0_86, %c8_87] : memref<8x32xf32, #tpu.memory_space<vmem>>, vector<8x8xf32>
    tpu.vector_store %arg11[%c0_86, %c8_87], %191 {strides = array<i32>} : memref<8x32xf32, #tpu.memory_space<vmem>>, vector<8x8xf32>,
    %193 = vector.extract_strided_slice %156 {offsets = [0, 16], sizes = [8, 8], strides = [1, 1]} : vector<8x32xbf16> to vector<8x8xbf16>
    %194 = vector.extract_strided_slice %157 {offsets = [0, 16], sizes = [16, 8], strides = [1, 1]} : vector<16x32xbf16> to vector<16x8xbf16>
    %cst_88 = arith.constant dense<0.000000e+00> : vector<8x16xf32>
    %195 = tpu.matmul %193, %194, %cst_88 {dimension_numbers = #tpu.dot_dimension_numbers<[1], [1], [0], [0], [0, 0, 1, 0], [], []>} : vector<8x8xbf16>, vector<16x8xbf16>, vector<8x16xf32> -> vector<8x16xf32>
    %cst_89 = arith.constant dense<0xFF800000> : vector<8xf32>
    %196 = vector.multi_reduction <maximumf>, %195, %cst_89 [1] : vector<8x16xf32> to vector<8xf32>
    %197 = vector.shape_cast %196 : vector<8xf32> to vector<8x1xf32>
    %198 = vector.broadcast %197 : vector<8x1xf32> to vector<8x16xf32>
    %199 = arith.subf %195, %198 : vector<8x16xf32>
    %200 = math.exp %199 : vector<8x16xf32>
    %cst_90 = arith.constant dense<0.000000e+00> : vector<8xf32>
    %201 = vector.multi_reduction <add>, %200, %cst_90 [1] : vector<8x16xf32> to vector<8xf32>
    %202 = vector.shape_cast %201 : vector<8xf32> to vector<8x1xf32>
    %203 = tpu.reciprocal %202 {approx = true} : vector<8x1xf32> -> vector<8x1xf32>
    %204 = vector.broadcast %203 : vector<8x1xf32> to vector<8x16xf32>
    %205 = arith.mulf %200, %204 : vector<8x16xf32>
    %206 = arith.truncf %205 : vector<8x16xf32> to vector<8x16xbf16>
    %207 = vector.extract_strided_slice %158 {offsets = [0, 16], sizes = [16, 8], strides = [1, 1]} : vector<16x32xbf16> to vector<16x8xbf16>
    %cst_91 = arith.constant dense<0.000000e+00> : vector<8x8xf32>
    %208 = tpu.matmul %206, %207, %cst_91 {dimension_numbers = #tpu.dot_dimension_numbers<[1], [0], [0], [1], [0, 0, 1, 1], [], []>} : vector<8x16xbf16>, vector<16x8xbf16>, vector<8x8xf32> -> vector<8x8xf32>
    %c0_92 = arith.constant 0 : index
    %c16_93 = arith.constant 16 : index
    %209 = vector.load %arg11[%c0_92, %c16_93] : memref<8x32xf32, #tpu.memory_space<vmem>>, vector<8x8xf32>
    tpu.vector_store %arg11[%c0_92, %c16_93], %208 {strides = array<i32>} : memref<8x32xf32, #tpu.memory_space<vmem>>, vector<8x8xf32>,
    %210 = vector.extract_strided_slice %156 {offsets = [0, 24], sizes = [8, 8], strides = [1, 1]} : vector<8x32xbf16> to vector<8x8xbf16>
    %211 = vector.extract_strided_slice %157 {offsets = [0, 24], sizes = [16, 8], strides = [1, 1]} : vector<16x32xbf16> to vector<16x8xbf16>
    %cst_94 = arith.constant dense<0.000000e+00> : vector<8x16xf32>
    %212 = tpu.matmul %210, %211, %cst_94 {dimension_numbers = #tpu.dot_dimension_numbers<[1], [1], [0], [0], [0, 0, 1, 0], [], []>} : vector<8x8xbf16>, vector<16x8xbf16>, vector<8x16xf32> -> vector<8x16xf32>
    %cst_95 = arith.constant dense<0xFF800000> : vector<8xf32>
    %213 = vector.multi_reduction <maximumf>, %212, %cst_95 [1] : vector<8x16xf32> to vector<8xf32>
    %214 = vector.shape_cast %213 : vector<8xf32> to vector<8x1xf32>
    %215 = vector.broadcast %214 : vector<8x1xf32> to vector<8x16xf32>
    %216 = arith.subf %212, %215 : vector<8x16xf32>
    %217 = math.exp %216 : vector<8x16xf32>
    %cst_96 = arith.constant dense<0.000000e+00> : vector<8xf32>
    %218 = vector.multi_reduction <add>, %217, %cst_96 [1] : vector<8x16xf32> to vector<8xf32>
    %219 = vector.shape_cast %218 : vector<8xf32> to vector<8x1xf32>
    %220 = tpu.reciprocal %219 {approx = true} : vector<8x1xf32> -> vector<8x1xf32>
    %221 = vector.broadcast %220 : vector<8x1xf32> to vector<8x16xf32>
    %222 = arith.mulf %217, %221 : vector<8x16xf32>
    %223 = arith.truncf %222 : vector<8x16xf32> to vector<8x16xbf16>
    %224 = vector.extract_strided_slice %158 {offsets = [0, 24], sizes = [16, 8], strides = [1, 1]} : vector<16x32xbf16> to vector<16x8xbf16>
    %cst_97 = arith.constant dense<0.000000e+00> : vector<8x8xf32>
    %225 = tpu.matmul %223, %224, %cst_97 {dimension_numbers = #tpu.dot_dimension_numbers<[1], [0], [0], [1], [0, 0, 1, 1], [], []>} : vector<8x16xbf16>, vector<16x8xbf16>, vector<8x8xf32> -> vector<8x8xf32>
    %c0_98 = arith.constant 0 : index
    %c24_99 = arith.constant 24 : index
    %226 = vector.load %arg11[%c0_98, %c24_99] : memref<8x32xf32, #tpu.memory_space<vmem>>, vector<8x8xf32>
    tpu.vector_store %arg11[%c0_98, %c24_99], %225 {strides = array<i32>} : memref<8x32xf32, #tpu.memory_space<vmem>>, vector<8x8xf32>,
    %c0_100 = arith.constant 0 : index
    %c0_101 = arith.constant 0 : index
    %227 = vector.load %arg11[%c0_100, %c0_101] : memref<8x32xf32, #tpu.memory_space<vmem>>, vector<8x32xf32>
    %228 = arith.truncf %227 : vector<8x32xf32> to vector<8x32xbf16>
    %cst_102 = arith.constant dense<0.000000e+00> : vector<8x32xf32>
    %229 = tpu.matmul %228, %20, %cst_102 {dimension_numbers = #tpu.dot_dimension_numbers<[1], [0], [0], [1], [0, 0, 1, 1], [], []>} : vector<8x32xbf16>, vector<32x32xbf16>, vector<8x32xf32> -> vector<8x32xf32>
    %230 = vector.broadcast %153 : vector<1x32xf32> to vector<8x32xf32>
    %231 = arith.addf %229, %230 : vector<8x32xf32>
    %232 = arith.addf %135, %231 : vector<8x32xf32>
    %cst_103 = arith.constant dense<0.000000e+00> : vector<8xf32>
    %233 = vector.multi_reduction <add>, %232, %cst_103 [1] : vector<8x32xf32> to vector<8xf32>
    %234 = vector.shape_cast %233 : vector<8xf32> to vector<8x1xf32>
    %cst_104 = arith.constant 3.200000e+01 : f32
    %235 = vector.broadcast %cst_104 : f32 to vector<8x1xf32>
    %236 = arith.divf %234, %235 : vector<8x1xf32>
    %237 = vector.broadcast %236 : vector<8x1xf32> to vector<8x32xf32>
    %238 = arith.subf %232, %237 : vector<8x32xf32>
    %239 = arith.mulf %238, %238 : vector<8x32xf32>
    %cst_105 = arith.constant dense<0.000000e+00> : vector<8xf32>
    %240 = vector.multi_reduction <add>, %239, %cst_105 [1] : vector<8x32xf32> to vector<8xf32>
    %241 = vector.shape_cast %240 : vector<8xf32> to vector<8x1xf32>
    %cst_106 = arith.constant 3.200000e+01 : f32
    %242 = vector.broadcast %cst_106 : f32 to vector<8x1xf32>
    %243 = arith.divf %241, %242 : vector<8x1xf32>
    %cst_107 = arith.constant 9.99999974E-6 : f32
    %244 = vector.broadcast %cst_107 : f32 to vector<8x1xf32>
    %245 = arith.addf %243, %244 : vector<8x1xf32>
    %246 = math.rsqrt %245 : vector<8x1xf32>
    %247 = vector.broadcast %246 : vector<8x1xf32> to vector<8x32xf32>
    %248 = arith.mulf %238, %247 : vector<8x32xf32>
    %c11 = arith.constant 11 : index
    %c0_108 = arith.constant 0 : index
    %249 = vector.load %arg9[%c11, %c0_108] : memref<15x64xf32, #tpu.memory_space<vmem>>, vector<1x32xf32>
    %250 = vector.broadcast %249 : vector<1x32xf32> to vector<8x32xf32>
    %251 = arith.mulf %248, %250 : vector<8x32xf32>
    %c12 = arith.constant 12 : index
    %c0_109 = arith.constant 0 : index
    %252 = vector.load %arg9[%c12, %c0_109] : memref<15x64xf32, #tpu.memory_space<vmem>>, vector<1x32xf32>
    %253 = vector.broadcast %252 : vector<1x32xf32> to vector<8x32xf32>
    %254 = arith.addf %251, %253 : vector<8x32xf32>
    %255 = arith.truncf %254 : vector<8x32xf32> to vector<8x32xbf16>
    %c0_110 = arith.constant 0 : index
    %c0_111 = arith.constant 0 : index
    %256 = vector.load %arg7[%c0_110, %c0_111] : memref<32x64xbf16, #tpu.memory_space<vmem>>, vector<32x64xbf16>
    %cst_112 = arith.constant dense<0.000000e+00> : vector<8x64xf32>
    %257 = tpu.matmul %255, %256, %cst_112 {dimension_numbers = #tpu.dot_dimension_numbers<[1], [0], [0], [1], [0, 0, 1, 1], [], []>} : vector<8x32xbf16>, vector<32x64xbf16>, vector<8x64xf32> -> vector<8x64xf32>
    %c7 = arith.constant 7 : index
    %c0_113 = arith.constant 0 : index
    %258 = vector.load %arg9[%c7, %c0_113] : memref<15x64xf32, #tpu.memory_space<vmem>>, vector<1x64xf32>
    %259 = vector.broadcast %258 : vector<1x64xf32> to vector<8x64xf32>
    %260 = arith.addf %257, %259 : vector<8x64xf32>
    %cst_114 = arith.constant 5.000000e-01 : f32
    %261 = vector.broadcast %cst_114 : f32 to vector<8x64xf32>
    %262 = arith.mulf %261, %260 : vector<8x64xf32>
    %cst_115 = arith.constant 0.707106769 : f32
    %263 = vector.broadcast %cst_115 : f32 to vector<8x64xf32>
    %264 = arith.mulf %260, %263 : vector<8x64xf32>
    %265 = math.erf %264 : vector<8x64xf32>
    %cst_116 = arith.constant 1.000000e+00 : f32
    %266 = vector.broadcast %cst_116 : f32 to vector<8x64xf32>
    %267 = arith.addf %266, %265 : vector<8x64xf32>
    %268 = arith.mulf %262, %267 : vector<8x64xf32>
    %269 = arith.truncf %268 : vector<8x64xf32> to vector<8x64xbf16>
    %c0_117 = arith.constant 0 : index
    %c0_118 = arith.constant 0 : index
    %270 = vector.load %arg8[%c0_117, %c0_118] : memref<64x32xbf16, #tpu.memory_space<vmem>>, vector<64x32xbf16>
    %cst_119 = arith.constant dense<0.000000e+00> : vector<8x32xf32>
    %271 = tpu.matmul %269, %270, %cst_119 {dimension_numbers = #tpu.dot_dimension_numbers<[1], [0], [0], [1], [0, 0, 1, 1], [], []>} : vector<8x64xbf16>, vector<64x32xbf16>, vector<8x32xf32> -> vector<8x32xf32>
    %c8_120 = arith.constant 8 : index
    %c0_121 = arith.constant 0 : index
    %272 = vector.load %arg9[%c8_120, %c0_121] : memref<15x64xf32, #tpu.memory_space<vmem>>, vector<1x32xf32>
    %273 = vector.broadcast %272 : vector<1x32xf32> to vector<8x32xf32>
    %274 = arith.addf %271, %273 : vector<8x32xf32>
    %275 = arith.addf %254, %274 : vector<8x32xf32>
    %cst_122 = arith.constant dense<0.000000e+00> : vector<8xf32>
    %276 = vector.multi_reduction <add>, %275, %cst_122 [1] : vector<8x32xf32> to vector<8xf32>
    %277 = vector.shape_cast %276 : vector<8xf32> to vector<8x1xf32>
    %cst_123 = arith.constant 3.200000e+01 : f32
    %278 = vector.broadcast %cst_123 : f32 to vector<8x1xf32>
    %279 = arith.divf %277, %278 : vector<8x1xf32>
    %280 = vector.broadcast %279 : vector<8x1xf32> to vector<8x32xf32>
    %281 = arith.subf %275, %280 : vector<8x32xf32>
    %282 = arith.mulf %281, %281 : vector<8x32xf32>
    %cst_124 = arith.constant dense<0.000000e+00> : vector<8xf32>
    %283 = vector.multi_reduction <add>, %282, %cst_124 [1] : vector<8x32xf32> to vector<8xf32>
    %284 = vector.shape_cast %283 : vector<8xf32> to vector<8x1xf32>
    %cst_125 = arith.constant 3.200000e+01 : f32
    %285 = vector.broadcast %cst_125 : f32 to vector<8x1xf32>
    %286 = arith.divf %284, %285 : vector<8x1xf32>
    %cst_126 = arith.constant 9.99999974E-6 : f32
    %287 = vector.broadcast %cst_126 : f32 to vector<8x1xf32>
    %288 = arith.addf %286, %287 : vector<8x1xf32>
    %289 = math.rsqrt %288 : vector<8x1xf32>
    %290 = vector.broadcast %289 : vector<8x1xf32> to vector<8x32xf32>
    %291 = arith.mulf %281, %290 : vector<8x32xf32>
    %c13 = arith.constant 13 : index
    %c0_127 = arith.constant 0 : index
    %292 = vector.load %arg9[%c13, %c0_127] : memref<15x64xf32, #tpu.memory_space<vmem>>, vector<1x32xf32>
    %293 = vector.broadcast %292 : vector<1x32xf32> to vector<8x32xf32>
    %294 = arith.mulf %291, %293 : vector<8x32xf32>
    %c14 = arith.constant 14 : index
    %c0_128 = arith.constant 0 : index
    %295 = vector.load %arg9[%c14, %c0_128] : memref<15x64xf32, #tpu.memory_space<vmem>>, vector<1x32xf32>
    %296 = vector.broadcast %295 : vector<1x32xf32> to vector<8x32xf32>
    %297 = arith.addf %294, %296 : vector<8x32xf32>
    %c0_129 = arith.constant 0 : index
    %c0_130 = arith.constant 0 : index
    %c0_131 = arith.constant 0 : index
    %298 = vector.load %arg10[%c0_129, %c0_130, %c0_131] : memref<1x8x32xf32, #tpu.memory_space<vmem>>, vector<1x8x32xf32>
    %299 = vector.shape_cast %298 : vector<1x8x32xf32> to vector<8x32xf32>
    %300 = vector.shape_cast %297 : vector<8x32xf32> to vector<1x8x32xf32>
    tpu.vector_store %arg10[%c0_129, %c0_130, %c0_131], %300 {strides = array<i32>} : memref<1x8x32xf32, #tpu.memory_space<vmem>>, vector<1x8x32xf32>,
    return
  }
  func.func @transform_0(%arg0: i32) -> (i32, i32, i32) {
    %c0_i32 = arith.constant 0 : i32
    %c0_i32_0 = arith.constant 0 : i32
    %c0_i32_1 = arith.constant 0 : i32
    return %arg0, %c0_i32, %c0_i32_0 : i32, i32, i32
  }
  func.func @transform_1(%arg0: i32) -> (i32, i32, i32) {
    %c0_i32 = arith.constant 0 : i32
    %c0_i32_0 = arith.constant 0 : i32
    %c0_i32_1 = arith.constant 0 : i32
    return %arg0, %c0_i32, %c0_i32_0 : i32, i32, i32
  }
  func.func @transform_2(%arg0: i32) -> (i32, i32, i32) {
    %c0_i32 = arith.constant 0 : i32
    %c0_i32_0 = arith.constant 0 : i32
    %c0_i32_1 = arith.constant 0 : i32
    return %arg0, %c0_i32, %c0_i32_0 : i32, i32, i32
  }
  func.func @transform_3(%arg0: i32) -> (i32, i32, i32) {
    %c0_i32 = arith.constant 0 : i32
    %c0_i32_0 = arith.constant 0 : i32
    %c0_i32_1 = arith.constant 0 : i32
    return %arg0, %c0_i32, %c0_i32_0 : i32, i32, i32
  }
  func.func @transform_4(%arg0: i32) -> (i32, i32) {
    %c0_i32 = arith.constant 0 : i32
    %c0_i32_0 = arith.constant 0 : i32
    %c0_i32_1 = arith.constant 0 : i32
    return %c0_i32, %c0_i32_0 : i32, i32
  }
  func.func @transform_5(%arg0: i32) -> (i32, i32, i32) {
    %c0_i32 = arith.constant 0 : i32
    %c0_i32_0 = arith.constant 0 : i32
    %c0_i32_1 = arith.constant 0 : i32
    %c0_i32_2 = arith.constant 0 : i32
    return %c0_i32, %c0_i32_0, %c0_i32_1 : i32, i32, i32
  }
  func.func @transform_6(%arg0: i32) -> (i32, i32) {
    %c0_i32 = arith.constant 0 : i32
    %c0_i32_0 = arith.constant 0 : i32
    %c0_i32_1 = arith.constant 0 : i32
    return %c0_i32, %c0_i32_0 : i32, i32
  }
  func.func @transform_7(%arg0: i32) -> (i32, i32) {
    %c0_i32 = arith.constant 0 : i32
    %c0_i32_0 = arith.constant 0 : i32
    %c0_i32_1 = arith.constant 0 : i32
    return %c0_i32, %c0_i32_0 : i32, i32
  }
  func.func @transform_8(%arg0: i32) -> (i32, i32) {
    %c0_i32 = arith.constant 0 : i32
    %c0_i32_0 = arith.constant 0 : i32
    %c0_i32_1 = arith.constant 0 : i32
    return %c0_i32, %c0_i32_0 : i32, i32
  }
  func.func @transform_9(%arg0: i32) -> (i32, i32, i32) {
    %c0_i32 = arith.constant 0 : i32
    %c0_i32_0 = arith.constant 0 : i32
    %c0_i32_1 = arith.constant 0 : i32
    return %arg0, %c0_i32, %c0_i32_0 : i32, i32, i32
  }
}

</mosaic_0001>

<llo_original>
// kernel: tpu_custom_call.1
$region0: #{tpu_custom_call.1}
  #allocation0 [shape = 'u32[]', space=smem, size = 0x4, offset = 0x4, fixed_abs, tag = 'smem constant byte address 0x4 - core index']
  #allocation1 [shape = 'u32[72,128]{1,0:T(1,128)}', space=vmem, size = 0x9000, scoped, tag = 'internal scratch']
  #allocation2 [shape = 'f32[8,32]{1,0:T(8,128)}', space=vmem, size = 0x1000, scoped, tag = 'scratch operand']
  %s0 = inlined_call_operand.vmem [shape: f32[2,8,32], index: 0, kind: input, shape index: {}]
  %s1 = inlined_call_operand.vmem [shape: f32[2,16,32], index: 1, kind: input, shape index: {}]
  %s2 = inlined_call_operand.hbm [shape: f32[2,8,32], index: 2, kind: input, shape index: {}]
  %s3 = inlined_call_operand.hbm [shape: f32[2,16,32], index: 3, kind: input, shape index: {}]
  %s4 = inlined_call_operand.hbm [shape: bf16[32,64], index: 4, kind: input, shape index: {}]
  %s5 = inlined_call_operand.hbm [shape: bf16[6,32,32], index: 5, kind: input, shape index: {}]
  %s6 = inlined_call_operand.hbm [shape: bf16[32,64], index: 6, kind: input, shape index: {}]
  %s7 = inlined_call_operand.vmem [shape: bf16[64,32], index: 7, kind: input, shape index: {}]
  %s8 = inlined_call_operand.hbm [shape: f32[15,64], index: 8, kind: input, shape index: {}]
  %s9 = inlined_call_operand.hbm [shape: f32[2,8,32], index: 9, kind: output, shape index: {}]
  %s10 = sld [smem:[#allocation0]]
  $region93: #{tpu_custom_call.1} parent=0
    _
  %s12 = ssub.s32 1, %s10
  %s13 = scalar_select 0, %s12, %s10
  $region1: #{tpu_custom_call.1} parent=0
    #allocation3 [shape = 'u8[8192]{0}', space=vmem, size = 0x2000, scoped, tag = 'input window, operand 2']
    #allocation4 [shape = 's32[2]{0}', space=sflag, size = 0x8, scoped, tag = 'scoped memory for tpu_custom_call.1']
    #allocation5 [shape = 's32[2]{0}', space=sflag, size = 0x8, scoped, tag = 'scoped memory for tpu_custom_call.1']
    #allocation6 [shape = 'u8[16384]{0}', space=vmem, size = 0x4000, scoped, tag = 'input window, operand 3']
    #allocation7 [shape = 's32[2]{0}', space=sflag, size = 0x8, scoped, tag = 'scoped memory for tpu_custom_call.1']
    #allocation8 [shape = 'u8[8192]{0}', space=vmem, size = 0x2000, scoped, tag = 'input window, operand 4, single buffered']
    #allocation9 [shape = 'u8[49152]{0}', space=vmem, size = 0xc000, scoped, tag = 'input window, operand 5, single buffered']
    #allocation10 [shape = 's32[1]{0}', space=sflag, size = 0x4, scoped, tag = 'scoped memory for tpu_custom_call.1']
    #allocation11 [shape = 'u8[8192]{0}', space=vmem, size = 0x2000, scoped, tag = 'input window, operand 6, single buffered']
    #allocation12 [shape = 'u8[8192]{0}', space=vmem, size = 0x2000, scoped, tag = 'input window, operand 8, single buffered']
    #allocation13 [shape = 's32[1]{0}', space=sflag, size = 0x4, scoped, tag = 'scoped memory for tpu_custom_call.1']
    #allocation14 [shape = 'u8[8192]{0}', space=vmem, size = 0x2000, scoped, tag = 'output window, operand 0']
    %14 = vsyncpa [#allocation4], 0
    %s15 = scalar_lea.sflag [#allocation4], 1
    %16 = vsyncpa %s15, 0
    %17 = vsyncpa [#allocation7], 0
    %s18 = scalar_lea.sflag [#allocation7], 1
    %19 = vsyncpa %s18, 0
    %20 = vsyncpa [#allocation10], 0
    %21 = vsyncpa [#allocation13], 0
    %22 = vsyncpa [#allocation5], 0
    %s23 = scalar_lea.sflag [#allocation5], 1
    %24 = vsyncpa %s23, 0
    loop: start=0, step=1, limit=4
    $region2: #{tpu_custom_call.1} parent=1 // loop_pre_header
      _
    $region3: #{tpu_custom_call.1} parent=1 // loop_header
      %s26 = sphi 0, %s30
      %p27 = scmp.ge.s32.totalorder %s26, 4
      %s36 = sphi 0, %s38
      %s39 = sphi 0, %s36
      %s40 = sphi 0, %s39
      %s56 = sphi 0, %s40
      %s62 = sphi 0, %s64
      %s65 = sphi 0, %s62
      %s66 = sphi 0, %s65
      %s82 = sphi 0, %s66
      %s88 = sphi 0, %s90
      %s91 = sphi 0, %s88
      %s92 = sphi 0, %s91
      %s108 = sphi 0, %s92
      %s114 = sphi 0, %s116
      %s117 = sphi 0, %s114
      %s118 = sphi 0, %s117
      %s134 = sphi 0, %s118
      %s138 = sphi 0, %s138
      %s140 = sphi 0, %s138
      %s141 = sphi 0, %s140
      %s155 = sphi 0, %s141
      %s159 = sphi 0, %s159
      %s161 = sphi 0, %s159
      %s162 = sphi 0, %s161
      %s176 = sphi 0, %s162
      %s180 = sphi 0, %s180
      %s182 = sphi 0, %s180
      %s183 = sphi 0, %s182
      %s197 = sphi 0, %s183
      %s201 = sphi 0, %s201
      %s203 = sphi 0, %s201
      %s204 = sphi 0, %s203
      %s218 = sphi 0, %s204
      %s222 = sphi 0, %s222
      %s224 = sphi 0, %s222
      %s225 = sphi 0, %s224
      %s239 = sphi 0, %s225
      %s245 = sphi 0, %s247
      %s248 = sphi 0, %s245
      %s249 = sphi 0, %s248
      %s265 = sphi 0, %s249
    $region4: #{tpu_custom_call.1} parent=1 // loop_header_branch
      %29 = sbr.rel (%p27) target = $region8
    $region5: #{tpu_custom_call.1} parent=1 // loop_body
      %s31 = ssub.s32 %s26, 1
      %s32 = ssub.s32 %s26, 2
      %s33 = sadd.s32 %s26, 1
      %s34 = ssub.s32 %s26, %s33
      %p35 = scmp.eq.s32.totalorder %s34, 0
      %s37 = sadd.s32 %s36, 1
      %s38 = scalar_select %p35, %s36, %s37
      %p41 = pneg %p35
      %p42 = scmp.eq.s32.totalorder %s26, 1
      %p43 = por %p41, %p42
      %p44 = scmp.ne.s32.totalorder %s36, %s39
      %p45 = scmp.eq.s32.totalorder %s26, 0
      %p46 = por %p44, %p45
      %p47 = scmp.ne.s32.totalorder %s36, %s39
      %p48 = scmp.eq.s32.totalorder %s31, 1
      %p49 = por %p47, %p48
      %p50 = scmp.ne.s32.totalorder %s39, %s40
      %p51 = scmp.eq.s32.totalorder %s31, 0
      %p52 = por %p50, %p51
      %p53 = scmp.ne.s32.totalorder %s39, %s40
      %p54 = scmp.eq.s32.totalorder %s32, 1
      %p55 = por %p53, %p54
      %p57 = scmp.ne.s32.totalorder %s40, %s56
      %p58 = scmp.eq.s32.totalorder %s32, 0
      %p59 = por %p57, %p58
      %s60 = ssub.s32 %s26, %s33
      %p61 = scmp.eq.s32.totalorder %s60, 0
      %s63 = sadd.s32 %s62, 1
      %s64 = scalar_select %p61, %s62, %s63
      %p67 = pneg %p61
      %p68 = scmp.eq.s32.totalorder %s26, 1
      %p69 = por %p67, %p68
      %p70 = scmp.ne.s32.totalorder %s62, %s65
      %p71 = scmp.eq.s32.totalorder %s26, 0
      %p72 = por %p70, %p71
      %p73 = scmp.ne.s32.totalorder %s62, %s65
      %p74 = scmp.eq.s32.totalorder %s31, 1
      %p75 = por %p73, %p74
      %p76 = scmp.ne.s32.totalorder %s65, %s66
      %p77 = scmp.eq.s32.totalorder %s31, 0
      %p78 = por %p76, %p77
      %p79 = scmp.ne.s32.totalorder %s65, %s66
      %p80 = scmp.eq.s32.totalorder %s32, 1
      %p81 = por %p79, %p80
      %p83 = scmp.ne.s32.totalorder %s66, %s82
      %p84 = scmp.eq.s32.totalorder %s32, 0
      %p85 = por %p83, %p84
      %s86 = ssub.s32 %s26, %s33
      %p87 = scmp.eq.s32.totalorder %s86, 0
      %s89 = sadd.s32 %s88, 1
      %s90 = scalar_select %p87, %s88, %s89
      %p93 = pneg %p87
      %p94 = scmp.eq.s32.totalorder %s26, 1
      %p95 = por %p93, %p94
      %p96 = scmp.ne.s32.totalorder %s88, %s91
      %p97 = scmp.eq.s32.totalorder %s26, 0
      %p98 = por %p96, %p97
      %p99 = scmp.ne.s32.totalorder %s88, %s91
      %p100 = scmp.eq.s32.totalorder %s31, 1
      %p101 = por %p99, %p100
      %p102 = scmp.ne.s32.totalorder %s91, %s92
      %p103 = scmp.eq.s32.totalorder %s31, 0
      %p104 = por %p102, %p103
      %p105 = scmp.ne.s32.totalorder %s91, %s92
      %p106 = scmp.eq.s32.totalorder %s32, 1
      %p107 = por %p105, %p106
      %p109 = scmp.ne.s32.totalorder %s92, %s108
      %p110 = scmp.eq.s32.totalorder %s32, 0
      %p111 = por %p109, %p110
      %s112 = ssub.s32 %s26, %s33
      %p113 = scmp.eq.s32.totalorder %s112, 0
      %s115 = sadd.s32 %s114, 1
      %s116 = scalar_select %p113, %s114, %s115
      %p119 = pneg %p113
      %p120 = scmp.eq.s32.totalorder %s26, 1
      %p121 = por %p119, %p120
      %p122 = scmp.ne.s32.totalorder %s114, %s117
      %p123 = scmp.eq.s32.totalorder %s26, 0
      %p124 = por %p122, %p123
      %p125 = scmp.ne.s32.totalorder %s114, %s117
      %p126 = scmp.eq.s32.totalorder %s31, 1
      %p127 = por %p125, %p126
      %p128 = scmp.ne.s32.totalorder %s117, %s118
      %p129 = scmp.eq.s32.totalorder %s31, 0
      %p130 = por %p128, %p129
      %p131 = scmp.ne.s32.totalorder %s117, %s118
      %p132 = scmp.eq.s32.totalorder %s32, 1
      %p133 = por %p131, %p132
      %p135 = scmp.ne.s32.totalorder %s118, %s134
      %p136 = scmp.eq.s32.totalorder %s32, 0
      %p137 = por %p135, %p136
      %s139 = sadd.s32 %s138, 1
      %p142 = scmp.eq.s32.totalorder %s26, 1
      %p143 = scmp.ne.s32.totalorder %s138, %s140
      %p144 = scmp.eq.s32.totalorder %s26, 0
      %p145 = por %p143, %p144
      %p146 = scmp.ne.s32.totalorder %s138, %s140
      %p147 = scmp.eq.s32.totalorder %s31, 1
      %p148 = por %p146, %p147
      %p149 = scmp.ne.s32.totalorder %s140, %s141
      %p150 = scmp.eq.s32.totalorder %s31, 0
      %p151 = por %p149, %p150
      %p152 = scmp.ne.s32.totalorder %s140, %s141
      %p153 = scmp.eq.s32.totalorder %s32, 1
      %p154 = por %p152, %p153
      %p156 = scmp.ne.s32.totalorder %s141, %s155
      %p157 = scmp.eq.s32.totalorder %s32, 0
      %p158 = por %p156, %p157
      %s160 = sadd.s32 %s159, 1
      %p163 = scmp.eq.s32.totalorder %s26, 1
      %p164 = scmp.ne.s32.totalorder %s159, %s161
      %p165 = scmp.eq.s32.totalorder %s26, 0
      %p166 = por %p164, %p165
      %p167 = scmp.ne.s32.totalorder %s159, %s161
      %p168 = scmp.eq.s32.totalorder %s31, 1
      %p169 = por %p167, %p168
      %p170 = scmp.ne.s32.totalorder %s161, %s162
      %p171 = scmp.eq.s32.totalorder %s31, 0
      %p172 = por %p170, %p171
      %p173 = scmp.ne.s32.totalorder %s161, %s162
      %p174 = scmp.eq.s32.totalorder %s32, 1
      %p175 = por %p173, %p174
      %p177 = scmp.ne.s32.totalorder %s162, %s176
      %p178 = scmp.eq.s32.totalorder %s32, 0
      %p179 = por %p177, %p178
      %s181 = sadd.s32 %s180, 1
      %p184 = scmp.eq.s32.totalorder %s26, 1
      %p185 = scmp.ne.s32.totalorder %s180, %s182
      %p186 = scmp.eq.s32.totalorder %s26, 0
      %p187 = por %p185, %p186
      %p188 = scmp.ne.s32.totalorder %s180, %s182
      %p189 = scmp.eq.s32.totalorder %s31, 1
      %p190 = por %p188, %p189
      %p191 = scmp.ne.s32.totalorder %s182, %s183
      %p192 = scmp.eq.s32.totalorder %s31, 0
      %p193 = por %p191, %p192
      %p194 = scmp.ne.s32.totalorder %s182, %s183
      %p195 = scmp.eq.s32.totalorder %s32, 1
      %p196 = por %p194, %p195
      %p198 = scmp.ne.s32.totalorder %s183, %s197
      %p199 = scmp.eq.s32.totalorder %s32, 0
      %p200 = por %p198, %p199
      %s202 = sadd.s32 %s201, 1
      %p205 = scmp.eq.s32.totalorder %s26, 1
      %p206 = scmp.ne.s32.totalorder %s201, %s203
      %p207 = scmp.eq.s32.totalorder %s26, 0
      %p208 = por %p206, %p207
      %p209 = scmp.ne.s32.totalorder %s201, %s203
      %p210 = scmp.eq.s32.totalorder %s31, 1
      %p211 = por %p209, %p210
      %p212 = scmp.ne.s32.totalorder %s203, %s204
      %p213 = scmp.eq.s32.totalorder %s31, 0
      %p214 = por %p212, %p213
      %p215 = scmp.ne.s32.totalorder %s203, %s204
      %p216 = scmp.eq.s32.totalorder %s32, 1
      %p217 = por %p215, %p216
      %p219 = scmp.ne.s32.totalorder %s204, %s218
      %p220 = scmp.eq.s32.totalorder %s32, 0
      %p221 = por %p219, %p220
      %s223 = sadd.s32 %s222, 1
      %p226 = scmp.eq.s32.totalorder %s26, 1
      %p227 = scmp.ne.s32.totalorder %s222, %s224
      %p228 = scmp.eq.s32.totalorder %s26, 0
      %p229 = por %p227, %p228
      %p230 = scmp.ne.s32.totalorder %s222, %s224
      %p231 = scmp.eq.s32.totalorder %s31, 1
      %p232 = por %p230, %p231
      %p233 = scmp.ne.s32.totalorder %s224, %s225
      %p234 = scmp.eq.s32.totalorder %s31, 0
      %p235 = por %p233, %p234
      %p236 = scmp.ne.s32.totalorder %s224, %s225
      %p237 = scmp.eq.s32.totalorder %s32, 1
      %p238 = por %p236, %p237
      %p240 = scmp.ne.s32.totalorder %s225, %s239
      %p241 = scmp.eq.s32.totalorder %s32, 0
      %p242 = por %p240, %p241
      %s243 = ssub.s32 %s26, %s33
      %p244 = scmp.eq.s32.totalorder %s243, 0
      %s246 = sadd.s32 %s245, 1
      %s247 = scalar_select %p244, %s245, %s246
      %p250 = pneg %p244
      %p251 = scmp.eq.s32.totalorder %s26, 1
      %p252 = por %p250, %p251
      %p253 = scmp.ne.s32.totalorder %s245, %s248
      %p254 = scmp.eq.s32.totalorder %s26, 0
      %p255 = por %p253, %p254
      %p256 = scmp.ne.s32.totalorder %s245, %s248
      %p257 = scmp.eq.s32.totalorder %s31, 1
      %p258 = por %p256, %p257
      %p259 = scmp.ne.s32.totalorder %s248, %s249
      %p260 = scmp.eq.s32.totalorder %s31, 0
      %p261 = por %p259, %p260
      %p262 = scmp.ne.s32.totalorder %s248, %s249
      %p263 = scmp.eq.s32.totalorder %s32, 1
      %p264 = por %p262, %p263
      %p266 = scmp.ne.s32.totalorder %s249, %s265
      %p267 = scmp.eq.s32.totalorder %s32, 0
      %p268 = por %p266, %p267
      %p269 = scmp.le.s32.totalorder 1, %s26
      %p270 = scmp.lt.s32.totalorder %s26, 3
      %p271 = pnand %p269, %p270
      %p272 = pneg %p271
      // Predicated region
      $region9: #{tpu_custom_call.1} parent=5 // pred_check
        _
      $region10: #{tpu_custom_call.1} parent=5 // pred_check_branch
        %274 = sbr.rel (%p271) target = $region12
      $region11: #{tpu_custom_call.1} parent=5 // pred_region
        %s275 = ssub.s32 %s26, 1
        // Predicated region
        $region13: #{tpu_custom_call.1} parent=11 // pred_check
          %p276 = pneg %p151
        $region14: #{tpu_custom_call.1} parent=11 // pred_check_branch
          %278 = sbr.rel (%p276) target = $region16
        $region15: #{tpu_custom_call.1} parent=11 // pred_region
          %280 = vsyncadd [#allocation7], 0
          %s281 = sshll.u32 %s4, 4
          %s282 = int_to_ptr.hbm [resolvable:$true] %s281
          %s283 = sshll.u32 [#allocation8], 4
          %s284 = int_to_ptr.vmem [resolvable:$true] %s283
          %289 = dma.hbm_to_vmem [thread:$0]  %s282, 256, %s284, [#allocation7], 64, 64, 4
        $region16: #{tpu_custom_call.1} parent=11 // pred_fallthru
          _
        // Predicated region
        $region17: #{tpu_custom_call.1} parent=11 // pred_check
          %p290 = pneg %p172
        $region18: #{tpu_custom_call.1} parent=11 // pred_check_branch
          %292 = sbr.rel (%p290) target = $region20
        $region19: #{tpu_custom_call.1} parent=11 // pred_region
          %294 = vsyncadd [#allocation10], 0
          %s295 = sshll.u32 %s5, 4
          %s296 = int_to_ptr.hbm [resolvable:$true] %s295
          %s297 = sshll.u32 [#allocation9], 4
          %s298 = int_to_ptr.vmem [resolvable:$true] %s297
          %303 = dma.hbm_to_vmem [thread:$0]  %s296, 1536, %s298, [#allocation10], 64, 64, 4
        $region20: #{tpu_custom_call.1} parent=11 // pred_fallthru
          _
        // Predicated region
        $region21: #{tpu_custom_call.1} parent=11 // pred_check
          %p304 = pneg %p193
        $region22: #{tpu_custom_call.1} parent=11 // pred_check_branch
          %306 = sbr.rel (%p304) target = $region24
        $region23: #{tpu_custom_call.1} parent=11 // pred_region
          %308 = vsyncadd [#allocation10], 0
          %s309 = sshll.u32 %s6, 4
          %s310 = int_to_ptr.hbm [resolvable:$true] %s309
          %s311 = sshll.u32 [#allocation11], 4
          %s312 = int_to_ptr.vmem [resolvable:$true] %s311
          %317 = dma.hbm_to_vmem [thread:$0]  %s310, 256, %s312, [#allocation10], 64, 64, 4
        $region24: #{tpu_custom_call.1} parent=11 // pred_fallthru
          _
        // Predicated region
        $region25: #{tpu_custom_call.1} parent=11 // pred_check
          %p318 = pneg %p214
        $region26: #{tpu_custom_call.1} parent=11 // pred_check_branch
          %320 = sbr.rel (%p318) target = $region28
        $region27: #{tpu_custom_call.1} parent=11 // pred_region
          _
        $region28: #{tpu_custom_call.1} parent=11 // pred_fallthru
          _
        // Predicated region
        $region29: #{tpu_custom_call.1} parent=11 // pred_check
          %p321 = pneg %p235
        $region30: #{tpu_custom_call.1} parent=11 // pred_check_branch
          %323 = sbr.rel (%p321) target = $region32
        $region31: #{tpu_custom_call.1} parent=11 // pred_region
          %325 = vsyncadd [#allocation13], 0
          %s326 = sshll.u32 %s8, 4
          %s327 = int_to_ptr.hbm [resolvable:$true] %s326
          %s328 = sshll.u32 [#allocation12], 4
          %s329 = int_to_ptr.vmem [resolvable:$true] %s328
          %334 = dma.hbm_to_vmem [thread:$0]  %s327, 256, %s329, [#allocation13], 128, 128, 8
        $region32: #{tpu_custom_call.1} parent=11 // pred_fallthru
          _
      $region12: #{tpu_custom_call.1} parent=5 // pred_fallthru
        _
      %p335 = scmp.lt.s32.totalorder %s26, 2
      // Predicated region
      $region33: #{tpu_custom_call.1} parent=5 // pred_check
        %p336 = pneg %p335
      $region34: #{tpu_custom_call.1} parent=5 // pred_check_branch
        %338 = sbr.rel (%p336) target = $region36
      $region35: #{tpu_custom_call.1} parent=5 // pred_region
        // Predicated region
        $region37: #{tpu_custom_call.1} parent=35 // pred_check
          %p339 = pneg %p46
        $region38: #{tpu_custom_call.1} parent=35 // pred_check_branch
          %341 = sbr.rel (%p339) target = $region40
        $region39: #{tpu_custom_call.1} parent=35 // pred_region
          %p342 = scmp.lt.s32.totalorder %s26, 1
          %s343 = scalar_select %p342, %s26, 1
          %s344 = smul.addr %s343, 8
          %s345 = scalar_lea.vmem %s0, %s344
        $region40: #{tpu_custom_call.1} parent=35 // pred_fallthru
          _
        // Predicated region
        $region41: #{tpu_custom_call.1} parent=35 // pred_check
          %p346 = pneg %p72
        $region42: #{tpu_custom_call.1} parent=35 // pred_check_branch
          %348 = sbr.rel (%p346) target = $region44
        $region43: #{tpu_custom_call.1} parent=35 // pred_region
          %p349 = scmp.lt.s32.totalorder %s26, 1
          %s350 = scalar_select %p349, %s26, 1
          %s351 = smul.addr %s350, 2
          %s352 = smul.addr %s351, 8
          %s353 = scalar_lea.vmem %s1, %s352
        $region44: #{tpu_custom_call.1} parent=35 // pred_fallthru
          _
        // Predicated region
        $region45: #{tpu_custom_call.1} parent=35 // pred_check
          %p354 = pneg %p98
        $region46: #{tpu_custom_call.1} parent=35 // pred_check_branch
          %356 = sbr.rel (%p354) target = $region48
        $region47: #{tpu_custom_call.1} parent=35 // pred_region
          %s357 = sand.u32 %s88, 1
          %s358 = scalar_lea.sflag [#allocation4], %s357
          %s359 = sand.u32 %s88, 1
          %s360 = smul.addr %s359, 8
          %s361 = scalar_lea.vmem [#allocation3], %s360
          %363 = vsyncadd %s358, 0
          %s364 = smul.addr %s26, 8
          %s365 = scalar_lea.hbm %s2, %s364
          %s367 = sshll.u32 %s365, 4
          %s368 = int_to_ptr.hbm [resolvable:$true] %s367
          %s369 = sshll.u32 %s361, 4
          %s370 = int_to_ptr.vmem [resolvable:$true] %s369
          %372 = dma.hbm_to_vmem [thread:$0]  %s368, 128, %s370, %s358
        $region48: #{tpu_custom_call.1} parent=35 // pred_fallthru
          _
        // Predicated region
        $region49: #{tpu_custom_call.1} parent=35 // pred_check
          %p373 = pneg %p124
        $region50: #{tpu_custom_call.1} parent=35 // pred_check_branch
          %375 = sbr.rel (%p373) target = $region52
        $region51: #{tpu_custom_call.1} parent=35 // pred_region
          %s376 = sand.u32 %s26, 1
          %s377 = scalar_lea.sflag [#allocation7], %s376
          %s378 = sand.u32 %s114, 1
          %s379 = smul.addr %s378, 16
          %s380 = scalar_lea.vmem [#allocation6], %s379
          %382 = vsyncadd %s377, 0
          %s383 = smul.addr %s26, 2
          %s384 = smul.addr %s383, 8
          %s385 = scalar_lea.hbm %s3, %s384
          %s386 = sshll.u32 %s385, 4
          %s387 = int_to_ptr.hbm [resolvable:$true] %s386
          %s388 = sshll.u32 %s380, 4
          %s389 = int_to_ptr.vmem [resolvable:$true] %s388
          %394 = dma.hbm_to_vmem [thread:$0]  %s387, 256, %s389, %s377, 128, 128, 8
        $region52: #{tpu_custom_call.1} parent=35 // pred_fallthru
          _
      $region36: #{tpu_custom_call.1} parent=5 // pred_fallthru
        _
      %p395 = scmp.le.s32.totalorder 1, %s26
      %p396 = scmp.lt.s32.totalorder %s26, 3
      %p397 = pnand %p395, %p396
      %p398 = pneg %p397
      // Predicated region
      $region53: #{tpu_custom_call.1} parent=5 // pred_check
        _
      $region54: #{tpu_custom_call.1} parent=5 // pred_check_branch
        %400 = sbr.rel (%p397) target = $region56
      $region55: #{tpu_custom_call.1} parent=5 // pred_region
        %s401 = ssub.s32 %s26, 1
        %s402 = sand.u32 %s91, 1
        %s403 = scalar_lea.sflag [#allocation4], %s402
        %s404 = sand.u32 %s91, 1
        %s405 = smul.addr %s404, 8
        %s406 = scalar_lea.vmem [#allocation3], %s405
        // Predicated region
        $region57: #{tpu_custom_call.1} parent=55 // pred_check
          %p407 = pneg %p104
        $region58: #{tpu_custom_call.1} parent=55 // pred_check_branch
          %409 = sbr.rel (%p407) target = $region60
        $region59: #{tpu_custom_call.1} parent=55 // pred_region
          %411 = dma.done %s403, 128
        $region60: #{tpu_custom_call.1} parent=55 // pred_fallthru
          _
        %s412 = sand.u32 %s31, 1
        %s413 = scalar_lea.sflag [#allocation7], %s412
        %s414 = sand.u32 %s117, 1
        %s415 = smul.addr %s414, 16
        %s416 = scalar_lea.vmem [#allocation6], %s415
        // Predicated region
        $region61: #{tpu_custom_call.1} parent=55 // pred_check
          %p417 = pneg %p130
        $region62: #{tpu_custom_call.1} parent=55 // pred_check_branch
          %419 = sbr.rel (%p417) target = $region64
        $region63: #{tpu_custom_call.1} parent=55 // pred_region
          %421 = dma.done %s413, 256
        $region64: #{tpu_custom_call.1} parent=55 // pred_fallthru
          _
        // Predicated region
        $region65: #{tpu_custom_call.1} parent=55 // pred_check
          %p422 = pneg %p151
        $region66: #{tpu_custom_call.1} parent=55 // pred_check_branch
          %424 = sbr.rel (%p422) target = $region68
        $region67: #{tpu_custom_call.1} parent=55 // pred_region
          %426 = dma.done [#allocation7], 256
        $region68: #{tpu_custom_call.1} parent=55 // pred_fallthru
          _
        // Predicated region
        $region69: #{tpu_custom_call.1} parent=55 // pred_check
          %p427 = pneg %p172
        $region70: #{tpu_custom_call.1} parent=55 // pred_check_branch
          %429 = sbr.rel (%p427) target = $region72
        $region71: #{tpu_custom_call.1} parent=55 // pred_region
          %431 = dma.done [#allocation10], 1536
        $region72: #{tpu_custom_call.1} parent=55 // pred_fallthru
          _
        // Predicated region
        $region73: #{tpu_custom_call.1} parent=55 // pred_check
          %p432 = pneg %p193
        $region74: #{tpu_custom_call.1} parent=55 // pred_check_branch
          %434 = sbr.rel (%p432) target = $region76
        $region75: #{tpu_custom_call.1} parent=55 // pred_region
          %436 = dma.done [#allocation10], 256
        $region76: #{tpu_custom_call.1} parent=55 // pred_fallthru
          _
        // Predicated region
        $region77: #{tpu_custom_call.1} parent=55 // pred_check
          %p437 = pneg %p235
        $region78: #{tpu_custom_call.1} parent=55 // pred_check_branch
          %439 = sbr.rel (%p437) target = $region80
        $region79: #{tpu_custom_call.1} parent=55 // pred_region
          %441 = dma.done [#allocation13], 256
        $region80: #{tpu_custom_call.1} parent=55 // pred_fallthru
          _
        %p442 = scmp.lt.s32.totalorder %s31, 1
        %s443 = scalar_select %p442, %s31, 1
        %s444 = smul.addr %s443, 8
        %s445 = scalar_lea.vmem %s0, %s444
        %p446 = pneg %p52
        %p447 = pneg %p49
        %p448 = scmp.lt.s32.totalorder %s31, 1
        %s449 = scalar_select %p448, %s31, 1
        %s450 = smul.addr %s449, 2
        %s451 = smul.addr %s450, 8
        %s452 = scalar_lea.vmem %s1, %s451
        %p453 = pneg %p78
        %p454 = pneg %p75
        %s455 = sand.u32 %s91, 1
        %s456 = scalar_lea.sflag [#allocation4], %s455
        %s457 = sand.u32 %s91, 1
        %s458 = smul.addr %s457, 8
        %s459 = scalar_lea.vmem [#allocation3], %s458
        %p460 = pneg %p104
        %p461 = pneg %p101
        %s462 = sand.u32 %s31, 1
        %s463 = scalar_lea.sflag [#allocation7], %s462
        %s464 = sand.u32 %s117, 1
        %s465 = smul.addr %s464, 16
        %s466 = scalar_lea.vmem [#allocation6], %s465
        %p467 = pneg %p130
        %p468 = pneg %p127
        %p469 = pneg %p151
        %p470 = pneg %p148
        %p471 = pneg %p172
        %p472 = pneg %p169
        %p473 = pneg %p193
        %p474 = pneg %p190
        %p475 = pneg %p214
        %p476 = pneg %p211
        %p477 = pneg %p235
        %p478 = pneg %p232
        %p479 = pneg %p261
        %p480 = pneg %p258
        %s481 = sand.u32 %s248, 1
        %s482 = scalar_lea.sflag [#allocation5], %s481
        %s483 = sand.u32 %s248, 1
        %s484 = smul.addr %s483, 8
        %s485 = scalar_lea.vmem [#allocation14], %s484
        %p486 = scmp.lt.s32.totalorder %s31, 1
        %s487 = scalar_select %p486, %s31, 1
        %s488 = smul.addr %s487, 8
        %s489 = scalar_lea.vmem %s0, %s488
        %p490 = scmp.lt.s32.totalorder %s31, 1
        %s491 = scalar_select %p490, %s31, 1
        %s492 = smul.addr %s491, 2
        %s493 = smul.addr %s492, 8
        %s494 = scalar_lea.vmem %s1, %s493
        %v496 = vld [vmem:[%s489] sm:$0xff]
        %v497 = vld [vmem:[%s406] sm:$0xff]
        %v498 = vld [vmem:[%s494] sm:$0xff]
        %v499 = vld [vmem:[%s494 + $0x8] sm:$0xff]
        %v500 = vld [vmem:[%s416] sm:$0xff]
        %v501 = vld [vmem:[%s416 + $0x8] sm:$0xff]
        %v502 = vld [vmem:[#allocation8] sm:$0xf]
        %v503 = vld [vmem:[#allocation8 + $0x4] sm:$0xf]
        %v504 = vld [vmem:[#allocation8 + $0x8] sm:$0xf]
        %v505 = vld [vmem:[#allocation8 + $0xc] sm:$0xf]
        %v506 = vld [vmem:[#allocation9] sm:$0xf]
        %v507 = vld [vmem:[#allocation9 + $0x4] sm:$0xf]
        %v508 = vld [vmem:[#allocation9 + $0x8] sm:$0xf]
        %v509 = vld [vmem:[#allocation9 + $0xc] sm:$0xf]
        %s510 = scalar_lea.vmem [#allocation9], 16
        %v511 = vld [vmem:[%s510] sm:$0xf]
        %v512 = vld [vmem:[%s510 + $0x4] sm:$0xf]
        %v513 = vld [vmem:[%s510 + $0x8] sm:$0xf]
        %v514 = vld [vmem:[%s510 + $0xc] sm:$0xf]
        %s515 = scalar_lea.vmem [#allocation9], 32
        %v516 = vld [vmem:[%s515] sm:$0xf]
        %v517 = vld [vmem:[%s515 + $0x4] sm:$0xf]
        %v518 = vld [vmem:[%s515 + $0x8] sm:$0xf]
        %v519 = vld [vmem:[%s515 + $0xc] sm:$0xf]
        %s520 = scalar_lea.vmem [#allocation9], 48
        %v521 = vld [vmem:[%s520] sm:$0xf]
        %v522 = vld [vmem:[%s520 + $0x4] sm:$0xf]
        %v523 = vld [vmem:[%s520 + $0x8] sm:$0xf]
        %v524 = vld [vmem:[%s520 + $0xc] sm:$0xf]
        %s525 = scalar_lea.vmem [#allocation9], 64
        %v526 = vld [vmem:[%s525] sm:$0xf]
        %v527 = vld [vmem:[%s525 + $0x4] sm:$0xf]
        %v528 = vld [vmem:[%s525 + $0x8] sm:$0xf]
        %v529 = vld [vmem:[%s525 + $0xc] sm:$0xf]
        %s530 = scalar_lea.vmem [#allocation9], 80
        %v531 = vld [vmem:[%s530] sm:$0xf]
        %v532 = vld [vmem:[%s530 + $0x4] sm:$0xf]
        %v533 = vld [vmem:[%s530 + $0x8] sm:$0xf]
        %v534 = vld [vmem:[%s530 + $0xc] sm:$0xf]
        %v535 = vadd.f32 %v496, %v497
        %v536 = vpack.c.bf16 %v535, %v535
        %v537 = vld [vmem:[#allocation12] sm:$0x1]
        %v538 = vperm.slane %v537, 0
        %v543 = vunpack.c.l.b16 %v502
        %v544 = vunpack.c.l.b16 %v503
        %v545 = vunpack.c.l.b16 %v504
        %v546 = vunpack.c.l.b16 %v505
        %v547 = vpack.c.b16 %v544, %v543
        %v548 = vpack.c.b16 %v546, %v545
        %vm551 = vcmask 261120
        %v553 = vsel %vm551, %v536, 0
        %555 = vmatpush.bf16.msra.mxu0 0
        %556 = vmatpush.bf16.msra.mxu0 0
        %557 = vmatpush.bf16.msra.mxu0 0
        %558 = vmatpush.bf16.msra.mxu0 0
        %559 = vmatpush.bf16.msra.mxu0 0
        %560 = vmatpush.bf16.msra.mxu0 0
        %561 = vmatpush.bf16.msra.mxu0 %v548
        %562 = vmatpush.bf16.msra.mxu0 %v547
        %563 = vmatmul.bf16.gmra.mxu0 %v553
        %v564 = vpop.f32.mrf.mxu0
        %v565 = vadd.f32 %v538, %v564
        %v566 = vpop.f32.mrf.mxu0
        %567 = vdwg.mxu0
        %v568 = vpack.c.bf16 %v496, %v496
        %v569 = vld [vmem:[#allocation12 + $0x1] sm:$0x1]
        %v570 = vperm.slane %v569, 0
        %v575 = vunpack.c.l.b16 %v506
        %v576 = vunpack.c.l.b16 %v507
        %v577 = vunpack.c.l.b16 %v508
        %v578 = vunpack.c.l.b16 %v509
        %v579 = vpack.c.b16 %v576, %v575
        %v580 = vpack.c.b16 %v578, %v577
        %v584 = vsel %vm551, %v568, 0
        %586 = vmatpush.bf16.msra.mxu0 0
        %587 = vmatpush.bf16.msra.mxu0 0
        %588 = vmatpush.bf16.msra.mxu0 0
        %589 = vmatpush.bf16.msra.mxu0 0
        %590 = vmatpush.bf16.msra.mxu0 0
        %591 = vmatpush.bf16.msra.mxu0 0
        %592 = vmatpush.bf16.msra.mxu0 %v580
        %593 = vmatpush.bf16.msra.mxu0 %v579
        %594 = vmatmul.bf16.gmra.mxu0 %v584
        %v595 = vpop.f32.mrf.mxu0
        %v596 = vadd.f32 %v570, %v595
        %v597 = vpop.f32.mrf.mxu0
        %598 = vdwg.mxu0
        %v599 = vld [vmem:[#allocation12 + $0x2] sm:$0x1]
        %v600 = vmul.f32 %v565, 0.35355338
        %v601 = vpack.c.bf16 %v600, %v600
        %v602 = vpack.c.bf16 %v565, %v565
        %v603 = vpack.c.bf16 %v596, %v596
        %v605 = vunpack.c.l.b16 %v602
        %v606 = vpack.c.b16 %v605, %v605
        %607 = vrot.lane.b32.xlu0 %v606, 96
        %v608 = vpop.permute.xlu0 %607
        %vm609 = vcmask 64512
        %v611 = vsel %vm609, %v601, 0
        %v614 = vsel %vm609, %v608, 0
        %616 = vmatpush.bf16.xpose.msra.mxu0 0
        %617 = vmatpush.bf16.xpose.msra.mxu0 0
        %618 = vmatpush.bf16.xpose.msra.mxu0 0
        %619 = vmatpush.bf16.xpose.msra.mxu0 0
        %620 = vmatpush.bf16.xpose.msra.mxu0 0
        %621 = vmatpush.bf16.xpose.msra.mxu0 0
        %622 = vmatpush.bf16.xpose.msra.mxu0 0
        %623 = vmatpush.bf16.xpose.msra.mxu0 %v614
        %624 = vmatmul.bf16.gmra.mxu0 %v611
        %v625 = vpop.f32.mrf.mxu0
        %v626 = vadd.f32 0.0, %v625
        %v627 = vpop.f32.mrf.mxu0
        %628 = vdwg.mxu0
        %v629 = vsel %vm609, %v626, -inf
        %630 = vmax.xlane.f32.xlu0 %v629
        %v631 = vpop.xlane.xlu0 %630
        %v632 = vsub.f32 %v626, %v631
        %v633 = vmul.f32 %v632, 1.442695
        %v634 = vpow.pop %v633
        %v635 = vsel %vm609, %v634, 0.0
        %636 = vadd.xlane.f32.xlu0 %v635
        %v637 = vpop.xlane.xlu0 %636
        %v638 = vrcp.pop %v637
        %v639 = vmul.f32 %v634, %v638
        %v640 = vpack.c.bf16 %v639, %v639
        %v642 = vsel %vm609, %v640, 0
        %vm644 = vcmask 1043456
        %v646 = vsel %vm644, %v603, 0
        %648 = vmatpush.bf16.msra.mxu0 0
        %649 = vmatpush.bf16.msra.mxu0 0
        %650 = vmatpush.bf16.msra.mxu0 0
        %651 = vmatpush.bf16.msra.mxu0 0
        %652 = vmatpush.bf16.msra.mxu0 0
        %653 = vmatpush.bf16.msra.mxu0 0
        %654 = vmatpush.bf16.msra.mxu0 0
        %655 = vmatpush.bf16.msra.mxu0 %v646
        %656 = vmatmul.bf16.gmra.mxu0 %v642
        %v657 = vpop.f32.mrf.mxu0
        %v658 = vadd.f32 0.0, %v657
        %v659 = vpop.f32.mrf.mxu0
        %660 = vdwg.mxu0
        %661 = vst.msk [vmem:[#allocation2] sm:$0xff] %vm609, %v658
        %v663 = vunpack.c.l.b16 %v601
        %v664 = vpack.c.b16 %v663, %v663
        %665 = vrot.lane.b32.xlu0 %v664, 120
        %v666 = vpop.permute.xlu0 %665
        %667 = vrot.lane.b32.xlu0 %v606, 88
        %v668 = vpop.permute.xlu0 %667
        %v670 = vsel %vm609, %v666, 0
        %v673 = vsel %vm609, %v668, 0
        %675 = vmatpush.bf16.xpose.msra.mxu0 0
        %676 = vmatpush.bf16.xpose.msra.mxu0 0
        %677 = vmatpush.bf16.xpose.msra.mxu0 0
        %678 = vmatpush.bf16.xpose.msra.mxu0 0
        %679 = vmatpush.bf16.xpose.msra.mxu0 0
        %680 = vmatpush.bf16.xpose.msra.mxu0 0
        %681 = vmatpush.bf16.xpose.msra.mxu0 0
        %682 = vmatpush.bf16.xpose.msra.mxu0 %v673
        %683 = vmatmul.bf16.gmra.mxu0 %v670
        %v684 = vpop.f32.mrf.mxu0
        %v685 = vadd.f32 0.0, %v684
        %v686 = vpop.f32.mrf.mxu0
        %687 = vdwg.mxu0
        %v688 = vsel %vm609, %v685, -inf
        %689 = vmax.xlane.f32.xlu0 %v688
        %v690 = vpop.xlane.xlu0 %689
        %v691 = vsub.f32 %v685, %v690
        %v692 = vmul.f32 %v691, 1.442695
        %v693 = vpow.pop %v692
        %v694 = vsel %vm609, %v693, 0.0
        %695 = vadd.xlane.f32.xlu0 %v694
        %v696 = vpop.xlane.xlu0 %695
        %v697 = vrcp.pop %v696
        %v698 = vmul.f32 %v693, %v697
        %v699 = vpack.c.bf16 %v698, %v698
        %v701 = vunpack.c.l.b16 %v603
        %v702 = vpack.c.b16 %v701, %v701
        %703 = vrot.lane.b32.xlu0 %v702, 120
        %v704 = vpop.permute.xlu0 %703
        %v706 = vsel %vm609, %v699, 0
        %v709 = vsel %vm644, %v704, 0
        %711 = vmatpush.bf16.msra.mxu0 0
        %712 = vmatpush.bf16.msra.mxu0 0
        %713 = vmatpush.bf16.msra.mxu0 0
        %714 = vmatpush.bf16.msra.mxu0 0
        %715 = vmatpush.bf16.msra.mxu0 0
        %716 = vmatpush.bf16.msra.mxu0 0
        %717 = vmatpush.bf16.msra.mxu0 0
        %718 = vmatpush.bf16.msra.mxu0 %v709
        %719 = vmatmul.bf16.gmra.mxu0 %v706
        %v720 = vpop.f32.mrf.mxu0
        %v721 = vadd.f32 0.0, %v720
        %v722 = vpop.f32.mrf.mxu0
        %723 = vdwg.mxu0
        %725 = vrot.lane.b32.xlu0 %v721, 8
        %v726 = vpop.permute.xlu0 %725
        %vm728 = vcmask 130112
        %729 = vst.msk [vmem:[#allocation2] sm:$0xff] %vm728, %v726
        %730 = vrot.lane.b32.xlu0 %v664, 112
        %v731 = vpop.permute.xlu0 %730
        %732 = vrot.lane.b32.xlu0 %v606, 80
        %v733 = vpop.permute.xlu0 %732
        %v735 = vsel %vm609, %v731, 0
        %v738 = vsel %vm609, %v733, 0
        %740 = vmatpush.bf16.xpose.msra.mxu0 0
        %741 = vmatpush.bf16.xpose.msra.mxu0 0
        %742 = vmatpush.bf16.xpose.msra.mxu0 0
        %743 = vmatpush.bf16.xpose.msra.mxu0 0
        %744 = vmatpush.bf16.xpose.msra.mxu0 0
        %745 = vmatpush.bf16.xpose.msra.mxu0 0
        %746 = vmatpush.bf16.xpose.msra.mxu0 0
        %747 = vmatpush.bf16.xpose.msra.mxu0 %v738
        %748 = vmatmul.bf16.gmra.mxu0 %v735
        %v749 = vpop.f32.mrf.mxu0
        %v750 = vadd.f32 0.0, %v749
        %v751 = vpop.f32.mrf.mxu0
        %752 = vdwg.mxu0
        %v753 = vsel %vm609, %v750, -inf
        %754 = vmax.xlane.f32.xlu0 %v753
        %v755 = vpop.xlane.xlu0 %754
        %v756 = vsub.f32 %v750, %v755
        %v757 = vmul.f32 %v756, 1.442695
        %v758 = vpow.pop %v757
        %v759 = vsel %vm609, %v758, 0.0
        %760 = vadd.xlane.f32.xlu0 %v759
        %v761 = vpop.xlane.xlu0 %760
        %v762 = vrcp.pop %v761
        %v763 = vmul.f32 %v758, %v762
        %v764 = vpack.c.bf16 %v763, %v763
        %765 = vrot.lane.b32.xlu0 %v702, 112
        %v766 = vpop.permute.xlu0 %765
        %v768 = vsel %vm609, %v764, 0
        %v771 = vsel %vm644, %v766, 0
        %773 = vmatpush.bf16.msra.mxu0 0
        %774 = vmatpush.bf16.msra.mxu0 0
        %775 = vmatpush.bf16.msra.mxu0 0
        %776 = vmatpush.bf16.msra.mxu0 0
        %777 = vmatpush.bf16.msra.mxu0 0
        %778 = vmatpush.bf16.msra.mxu0 0
        %779 = vmatpush.bf16.msra.mxu0 0
        %780 = vmatpush.bf16.msra.mxu0 %v771
        %781 = vmatmul.bf16.gmra.mxu0 %v768
        %v782 = vpop.f32.mrf.mxu0
        %v783 = vadd.f32 0.0, %v782
        %v784 = vpop.f32.mrf.mxu0
        %785 = vdwg.mxu0
        %787 = vrot.lane.b32.xlu0 %v783, 16
        %v788 = vpop.permute.xlu0 %787
        %vm790 = vcmask 195712
        %791 = vst.msk [vmem:[#allocation2] sm:$0xff] %vm790, %v788
        %792 = vrot.lane.b32.xlu0 %v664, 104
        %v793 = vpop.permute.xlu0 %792
        %794 = vrot.lane.b32.xlu0 %v606, 72
        %v795 = vpop.permute.xlu0 %794
        %v797 = vsel %vm609, %v793, 0
        %v800 = vsel %vm609, %v795, 0
        %802 = vmatpush.bf16.xpose.msra.mxu0 0
        %803 = vmatpush.bf16.xpose.msra.mxu0 0
        %804 = vmatpush.bf16.xpose.msra.mxu0 0
        %805 = vmatpush.bf16.xpose.msra.mxu0 0
        %806 = vmatpush.bf16.xpose.msra.mxu0 0
        %807 = vmatpush.bf16.xpose.msra.mxu0 0
        %808 = vmatpush.bf16.xpose.msra.mxu0 0
        %809 = vmatpush.bf16.xpose.msra.mxu0 %v800
        %810 = vmatmul.bf16.gmra.mxu0 %v797
        %v811 = vpop.f32.mrf.mxu0
        %v812 = vadd.f32 0.0, %v811
        %v813 = vpop.f32.mrf.mxu0
        %814 = vdwg.mxu0
        %v815 = vsel %vm609, %v812, -inf
        %816 = vmax.xlane.f32.xlu0 %v815
        %v817 = vpop.xlane.xlu0 %816
        %v818 = vsub.f32 %v812, %v817
        %v819 = vmul.f32 %v818, 1.442695
        %v820 = vpow.pop %v819
        %v821 = vsel %vm609, %v820, 0.0
        %822 = vadd.xlane.f32.xlu0 %v821
        %v823 = vpop.xlane.xlu0 %822
        %v824 = vrcp.pop %v823
        %v825 = vmul.f32 %v820, %v824
        %v826 = vpack.c.bf16 %v825, %v825
        %827 = vrot.lane.b32.xlu0 %v702, 104
        %v828 = vpop.permute.xlu0 %827
        %v830 = vsel %vm609, %v826, 0
        %v833 = vsel %vm644, %v828, 0
        %835 = vmatpush.bf16.msra.mxu0 0
        %836 = vmatpush.bf16.msra.mxu0 0
        %837 = vmatpush.bf16.msra.mxu0 0
        %838 = vmatpush.bf16.msra.mxu0 0
        %839 = vmatpush.bf16.msra.mxu0 0
        %840 = vmatpush.bf16.msra.mxu0 0
        %841 = vmatpush.bf16.msra.mxu0 0
        %842 = vmatpush.bf16.msra.mxu0 %v833
        %843 = vmatmul.bf16.gmra.mxu0 %v830
        %v844 = vpop.f32.mrf.mxu0
        %v845 = vadd.f32 0.0, %v844
        %v846 = vpop.f32.mrf.mxu0
        %847 = vdwg.mxu0
        %849 = vrot.lane.b32.xlu0 %v845, 24
        %v850 = vpop.permute.xlu0 %849
        %vm852 = vcmask 261312
        %853 = vst.msk [vmem:[#allocation2] sm:$0xff] %vm852, %v850
        %v854 = vld [vmem:[#allocation2] sm:$0xff]
        %v855 = vpack.c.bf16 %v854, %v854
        %v856 = vperm.slane %v599, 0
        %v861 = vunpack.c.l.b16 %v511
        %v862 = vunpack.c.l.b16 %v512
        %v863 = vunpack.c.l.b16 %v513
        %v864 = vunpack.c.l.b16 %v514
        %v865 = vpack.c.b16 %v862, %v861
        %v866 = vpack.c.b16 %v864, %v863
        %v870 = vsel %vm551, %v855, 0
        %872 = vmatpush.bf16.msra.mxu0 0
        %873 = vmatpush.bf16.msra.mxu0 0
        %874 = vmatpush.bf16.msra.mxu0 0
        %875 = vmatpush.bf16.msra.mxu0 0
        %876 = vmatpush.bf16.msra.mxu0 0
        %877 = vmatpush.bf16.msra.mxu0 0
        %878 = vmatpush.bf16.msra.mxu0 %v866
        %879 = vmatpush.bf16.msra.mxu0 %v865
        %880 = vmatmul.bf16.gmra.mxu0 %v870
        %v881 = vpop.f32.mrf.mxu0
        %v882 = vadd.f32 %v856, %v881
        %v883 = vpop.f32.mrf.mxu0
        %884 = vdwg.mxu0
        %v885 = vadd.f32 %v496, %v882
        %v886 = vsel %vm551, %v885, 0.0
        %887 = vadd.xlane.f32.xlu0 %v886
        %v888 = vpop.xlane.xlu0 %887
        %v889 = vrcp.pop 32.0
        %v890 = vmul.f32 32.0, %v889
        %v891 = vsub.f32 1.0, %v890
        %v892 = vmul.f32 %v889, %v891
        %v893 = vadd.f32 %v889, %v892
        %vm894 = vweird.f32 %v889
        %v895 = vsel %vm894, %v889, %v893
        %v896 = vmul.f32 %v888, %v895
        %v897 = vsub.f32 %v885, %v896
        %v898 = vmul.f32 %v897, %v897
        %v899 = vsel %vm551, %v898, 0.0
        %900 = vadd.xlane.f32.xlu0 %v899
        %v901 = vpop.xlane.xlu0 %900
        %v902 = vmul.f32 %v901, %v895
        %v903 = vadd.f32 %v902, 1e-05
        %v904 = vrsqrt.pop %v903
        %v905 = vmul.f32 %v904, %v903
        %v906 = vmul.f32 %v905, %v904
        %v907 = vmul.f32 0.5, %v906
        %v908 = vsub.f32 1.5, %v907
        %v909 = vmul.f32 %v904, %v908
        %vm910 = vweird.f32 %v903
        %vm911 = vweird.f32 %v904
        %vm912 = vmor %vm910, %vm911
        %v913 = vsel %vm912, %v904, %v909
        %v914 = vmul.f32 %v897, %v913
        %v915 = vld [vmem:[#allocation12 + $0x9] sm:$0x1]
        %v916 = vperm.slane %v915, 0
        %v917 = vmul.f32 %v914, %v916
        %v918 = vld [vmem:[#allocation12 + $0xa] sm:$0x1]
        %v919 = vperm.slane %v918, 0
        %v920 = vadd.f32 %v917, %v919
        %v921 = vadd.f32 %v920, %v497
        %v922 = vpack.c.bf16 %v921, %v921
        %v923 = vld [vmem:[#allocation12 + $0x3] sm:$0x1]
        %v924 = vperm.slane %v923, 0
        %v929 = vunpack.c.l.b16 %v516
        %v930 = vunpack.c.l.b16 %v517
        %v931 = vunpack.c.l.b16 %v518
        %v932 = vunpack.c.l.b16 %v519
        %v933 = vpack.c.b16 %v930, %v929
        %v934 = vpack.c.b16 %v932, %v931
        %v938 = vsel %vm551, %v922, 0
        %940 = vmatpush.bf16.msra.mxu0 0
        %941 = vmatpush.bf16.msra.mxu0 0
        %942 = vmatpush.bf16.msra.mxu0 0
        %943 = vmatpush.bf16.msra.mxu0 0
        %944 = vmatpush.bf16.msra.mxu0 0
        %945 = vmatpush.bf16.msra.mxu0 0
        %946 = vmatpush.bf16.msra.mxu0 %v934
        %947 = vmatpush.bf16.msra.mxu0 %v933
        %948 = vmatmul.bf16.gmra.mxu0 %v938
        %v949 = vpop.f32.mrf.mxu0
        %v950 = vadd.f32 %v924, %v949
        %v951 = vpop.f32.mrf.mxu0
        %952 = vdwg.mxu0
        %v953 = vadd.f32 %v498, %v500
        %v954 = vadd.f32 %v499, %v501
        %v955 = vpack.c.bf16 %v954, %v953
        %v956 = vld [vmem:[#allocation12 + $0x4] sm:$0x1]
        %v957 = vperm.slane %v956, 0
        %v962 = vunpack.c.l.b16 %v521
        %v963 = vunpack.c.l.b16 %v522
        %v964 = vunpack.c.l.b16 %v523
        %v965 = vunpack.c.l.b16 %v524
        %v966 = vpack.c.b16 %v963, %v962
        %v967 = vpack.c.b16 %v965, %v964
        %v971 = vsel %vm551, %v955, 0
        %973 = vmatpush.bf16.msra.mxu0 0
        %974 = vmatpush.bf16.msra.mxu0 0
        %975 = vmatpush.bf16.msra.mxu0 0
        %976 = vmatpush.bf16.msra.mxu0 0
        %977 = vmatpush.bf16.msra.mxu0 0
        %978 = vmatpush.bf16.msra.mxu0 0
        %979 = vmatpush.bf16.msra.mxu0 %v967
        %980 = vmatpush.bf16.msra.mxu0 %v966
        %981 = vmatmul.bf16.gmra.mxu0 %v971
        %v982 = vpop.f32.mrf.mxu0
        %v983 = vadd.f32 %v957, %v982
        %v984 = vpop.f32.mrf.mxu0
        %v985 = vadd.f32 %v957, %v984
        %986 = vdwg.mxu0
        %v987 = vpack.c.bf16 %v499, %v498
        %v988 = vld [vmem:[#allocation12 + $0x5] sm:$0x1]
        %v989 = vperm.slane %v988, 0
        %v994 = vunpack.c.l.b16 %v526
        %v995 = vunpack.c.l.b16 %v527
        %v996 = vunpack.c.l.b16 %v528
        %v997 = vunpack.c.l.b16 %v529
        %v998 = vpack.c.b16 %v995, %v994
        %v999 = vpack.c.b16 %v997, %v996
        %v1003 = vsel %vm551, %v987, 0
        %1005 = vmatpush.bf16.msra.mxu0 0
        %1006 = vmatpush.bf16.msra.mxu0 0
        %1007 = vmatpush.bf16.msra.mxu0 0
        %1008 = vmatpush.bf16.msra.mxu0 0
        %1009 = vmatpush.bf16.msra.mxu0 0
        %1010 = vmatpush.bf16.msra.mxu0 0
        %1011 = vmatpush.bf16.msra.mxu0 %v999
        %1012 = vmatpush.bf16.msra.mxu0 %v998
        %1013 = vmatmul.bf16.gmra.mxu0 %v1003
        %v1014 = vpop.f32.mrf.mxu0
        %v1015 = vadd.f32 %v989, %v1014
        %v1016 = vpop.f32.mrf.mxu0
        %v1017 = vadd.f32 %v989, %v1016
        %1018 = vdwg.mxu0
        %v1019 = vld [vmem:[#allocation12 + $0x6] sm:$0x1]
        %v1020 = vmul.f32 %v950, 0.35355338
        %v1021 = vpack.c.bf16 %v1020, %v1020
        %v1022 = vpack.c.bf16 %v983, %v983
        %v1023 = vpack.c.bf16 %v985, %v985
        %v1024 = vpack.c.bf16 %v1015, %v1015
        %v1025 = vpack.c.bf16 %v1017, %v1017
        %v1028 = vunpack.c.l.b16 %v1022
        %v1029 = vunpack.c.l.b16 %v1023
        %v1030 = vpack.c.b16 %v1029, %v1028
        %v1032 = vsel %vm609, %v1021, 0
        %v1035 = vsel %vm609, %v1030, 0
        %1037 = vmatpush.bf16.xpose.msra.mxu0 0
        %1038 = vmatpush.bf16.xpose.msra.mxu0 0
        %1039 = vmatpush.bf16.xpose.msra.mxu0 0
        %1040 = vmatpush.bf16.xpose.msra.mxu0 0
        %1041 = vmatpush.bf16.xpose.msra.mxu0 0
        %1042 = vmatpush.bf16.xpose.msra.mxu0 0
        %1043 = vmatpush.bf16.xpose.msra.mxu0 0
        %1044 = vmatpush.bf16.xpose.msra.mxu0 %v1035
        %1045 = vmatmul.bf16.gmra.mxu0 %v1032
        %v1046 = vpop.f32.mrf.mxu0
        %v1047 = vadd.f32 0.0, %v1046
        %v1048 = vpop.f32.mrf.mxu0
        %1049 = vdwg.mxu0
        %vm1050 = vcmask 130048
        %v1051 = vsel %vm1050, %v1047, -inf
        %1052 = vmax.xlane.f32.xlu0 %v1051
        %v1053 = vpop.xlane.xlu0 %1052
        %v1054 = vsub.f32 %v1047, %v1053
        %v1055 = vmul.f32 %v1054, 1.442695
        %v1056 = vpow.pop %v1055
        %v1057 = vsel %vm1050, %v1056, 0.0
        %1058 = vadd.xlane.f32.xlu0 %v1057
        %v1059 = vpop.xlane.xlu0 %1058
        %v1060 = vrcp.pop %v1059
        %v1061 = vmul.f32 %v1056, %v1060
        %v1062 = vpack.c.bf16 %v1061, %v1061
        %v1065 = vunpack.c.l.b16 %v1024
        %v1066 = vunpack.c.l.b16 %v1025
        %v1067 = vpack.c.b16 %v1066, %v1065
        %v1070 = vsel %vm1050, %v1062, 0
        %1072 = vmatpush.bf16.msra.mxu0 0
        %1073 = vmatpush.bf16.msra.mxu0 0
        %1074 = vmatpush.bf16.msra.mxu0 0
        %1075 = vmatpush.bf16.msra.mxu0 0
        %1076 = vmatpush.bf16.msra.mxu0 0
        %1077 = vmatpush.bf16.msra.mxu0 0
        %1078 = vmatpush.bf16.msra.mxu0 0
        %1079 = vmatpush.bf16.msra.mxu0 %v1067
        %1080 = vmatmul.bf16.gmra.mxu0 %v1070
        %v1081 = vpop.f32.mrf.mxu0
        %v1082 = vadd.f32 0.0, %v1081
        %v1083 = vpop.f32.mrf.mxu0
        %1084 = vdwg.mxu0
        %1085 = vst.msk [vmem:[#allocation2] sm:$0xff] %vm609, %v1082
        %v1087 = vunpack.c.l.b16 %v1021
        %v1088 = vpack.c.b16 %v1087, %v1087
        %1089 = vrot.lane.b32.xlu0 %v1088, 120
        %v1090 = vpop.permute.xlu0 %1089
        %1091 = vrot.lane.b32.xlu0 %v1030, 120
        %v1092 = vpop.permute.xlu0 %1091
        %v1094 = vsel %vm609, %v1090, 0
        %v1097 = vsel %vm609, %v1092, 0
        %1099 = vmatpush.bf16.xpose.msra.mxu0 0
        %1100 = vmatpush.bf16.xpose.msra.mxu0 0
        %1101 = vmatpush.bf16.xpose.msra.mxu0 0
        %1102 = vmatpush.bf16.xpose.msra.mxu0 0
        %1103 = vmatpush.bf16.xpose.msra.mxu0 0
        %1104 = vmatpush.bf16.xpose.msra.mxu0 0
        %1105 = vmatpush.bf16.xpose.msra.mxu0 0
        %1106 = vmatpush.bf16.xpose.msra.mxu0 %v1097
        %1107 = vmatmul.bf16.gmra.mxu0 %v1094
        %v1108 = vpop.f32.mrf.mxu0
        %v1109 = vadd.f32 0.0, %v1108
        %v1110 = vpop.f32.mrf.mxu0
        %1111 = vdwg.mxu0
        %v1112 = vsel %vm1050, %v1109, -inf
        %1113 = vmax.xlane.f32.xlu0 %v1112
        %v1114 = vpop.xlane.xlu0 %1113
        %v1115 = vsub.f32 %v1109, %v1114
        %v1116 = vmul.f32 %v1115, 1.442695
        %v1117 = vpow.pop %v1116
        %v1118 = vsel %vm1050, %v1117, 0.0
        %1119 = vadd.xlane.f32.xlu0 %v1118
        %v1120 = vpop.xlane.xlu0 %1119
        %v1121 = vrcp.pop %v1120
        %v1122 = vmul.f32 %v1117, %v1121
        %v1123 = vpack.c.bf16 %v1122, %v1122
        %1124 = vrot.lane.b32.xlu0 %v1067, 120
        %v1125 = vpop.permute.xlu0 %1124
        %v1128 = vsel %vm1050, %v1123, 0
        %1130 = vmatpush.bf16.msra.mxu0 0
        %1131 = vmatpush.bf16.msra.mxu0 0
        %1132 = vmatpush.bf16.msra.mxu0 0
        %1133 = vmatpush.bf16.msra.mxu0 0
        %1134 = vmatpush.bf16.msra.mxu0 0
        %1135 = vmatpush.bf16.msra.mxu0 0
        %1136 = vmatpush.bf16.msra.mxu0 0
        %1137 = vmatpush.bf16.msra.mxu0 %v1125
        %1138 = vmatmul.bf16.gmra.mxu0 %v1128
        %v1139 = vpop.f32.mrf.mxu0
        %v1140 = vadd.f32 0.0, %v1139
        %v1141 = vpop.f32.mrf.mxu0
        %1142 = vdwg.mxu0
        %1144 = vrot.lane.b32.xlu0 %v1140, 8
        %v1145 = vpop.permute.xlu0 %1144
        %1147 = vst.msk [vmem:[#allocation2] sm:$0xff] %vm728, %v1145
        %1148 = vrot.lane.b32.xlu0 %v1088, 112
        %v1149 = vpop.permute.xlu0 %1148
        %1150 = vrot.lane.b32.xlu0 %v1030, 112
        %v1151 = vpop.permute.xlu0 %1150
        %v1153 = vsel %vm609, %v1149, 0
        %v1156 = vsel %vm609, %v1151, 0
        %1158 = vmatpush.bf16.xpose.msra.mxu0 0
        %1159 = vmatpush.bf16.xpose.msra.mxu0 0
        %1160 = vmatpush.bf16.xpose.msra.mxu0 0
        %1161 = vmatpush.bf16.xpose.msra.mxu0 0
        %1162 = vmatpush.bf16.xpose.msra.mxu0 0
        %1163 = vmatpush.bf16.xpose.msra.mxu0 0
        %1164 = vmatpush.bf16.xpose.msra.mxu0 0
        %1165 = vmatpush.bf16.xpose.msra.mxu0 %v1156
        %1166 = vmatmul.bf16.gmra.mxu0 %v1153
        %v1167 = vpop.f32.mrf.mxu0
        %v1168 = vadd.f32 0.0, %v1167
        %v1169 = vpop.f32.mrf.mxu0
        %1170 = vdwg.mxu0
        %v1171 = vsel %vm1050, %v1168, -inf
        %1172 = vmax.xlane.f32.xlu0 %v1171
        %v1173 = vpop.xlane.xlu0 %1172
        %v1174 = vsub.f32 %v1168, %v1173
        %v1175 = vmul.f32 %v1174, 1.442695
        %v1176 = vpow.pop %v1175
        %v1177 = vsel %vm1050, %v1176, 0.0
        %1178 = vadd.xlane.f32.xlu0 %v1177
        %v1179 = vpop.xlane.xlu0 %1178
        %v1180 = vrcp.pop %v1179
        %v1181 = vmul.f32 %v1176, %v1180
        %v1182 = vpack.c.bf16 %v1181, %v1181
        %1183 = vrot.lane.b32.xlu0 %v1067, 112
        %v1184 = vpop.permute.xlu0 %1183
        %v1187 = vsel %vm1050, %v1182, 0
        %1189 = vmatpush.bf16.msra.mxu0 0
        %1190 = vmatpush.bf16.msra.mxu0 0
        %1191 = vmatpush.bf16.msra.mxu0 0
        %1192 = vmatpush.bf16.msra.mxu0 0
        %1193 = vmatpush.bf16.msra.mxu0 0
        %1194 = vmatpush.bf16.msra.mxu0 0
        %1195 = vmatpush.bf16.msra.mxu0 0
        %1196 = vmatpush.bf16.msra.mxu0 %v1184
        %1197 = vmatmul.bf16.gmra.mxu0 %v1187
        %v1198 = vpop.f32.mrf.mxu0
        %v1199 = vadd.f32 0.0, %v1198
        %v1200 = vpop.f32.mrf.mxu0
        %1201 = vdwg.mxu0
        %1203 = vrot.lane.b32.xlu0 %v1199, 16
        %v1204 = vpop.permute.xlu0 %1203
        %1206 = vst.msk [vmem:[#allocation2] sm:$0xff] %vm790, %v1204
        %1207 = vrot.lane.b32.xlu0 %v1088, 104
        %v1208 = vpop.permute.xlu0 %1207
        %1209 = vrot.lane.b32.xlu0 %v1030, 104
        %v1210 = vpop.permute.xlu0 %1209
        %v1212 = vsel %vm609, %v1208, 0
        %v1215 = vsel %vm609, %v1210, 0
        %1217 = vmatpush.bf16.xpose.msra.mxu0 0
        %1218 = vmatpush.bf16.xpose.msra.mxu0 0
        %1219 = vmatpush.bf16.xpose.msra.mxu0 0
        %1220 = vmatpush.bf16.xpose.msra.mxu0 0
        %1221 = vmatpush.bf16.xpose.msra.mxu0 0
        %1222 = vmatpush.bf16.xpose.msra.mxu0 0
        %1223 = vmatpush.bf16.xpose.msra.mxu0 0
        %1224 = vmatpush.bf16.xpose.msra.mxu0 %v1215
        %1225 = vmatmul.bf16.gmra.mxu0 %v1212
        %v1226 = vpop.f32.mrf.mxu0
        %v1227 = vadd.f32 0.0, %v1226
        %v1228 = vpop.f32.mrf.mxu0
        %1229 = vdwg.mxu0
        %v1230 = vsel %vm1050, %v1227, -inf
        %1231 = vmax.xlane.f32.xlu0 %v1230
        %v1232 = vpop.xlane.xlu0 %1231
        %v1233 = vsub.f32 %v1227, %v1232
        %v1234 = vmul.f32 %v1233, 1.442695
        %v1235 = vpow.pop %v1234
        %v1236 = vsel %vm1050, %v1235, 0.0
        %1237 = vadd.xlane.f32.xlu0 %v1236
        %v1238 = vpop.xlane.xlu0 %1237
        %v1239 = vrcp.pop %v1238
        %v1240 = vmul.f32 %v1235, %v1239
        %v1241 = vpack.c.bf16 %v1240, %v1240
        %1242 = vrot.lane.b32.xlu0 %v1067, 104
        %v1243 = vpop.permute.xlu0 %1242
        %v1246 = vsel %vm1050, %v1241, 0
        %1248 = vmatpush.bf16.msra.mxu0 0
        %1249 = vmatpush.bf16.msra.mxu0 0
        %1250 = vmatpush.bf16.msra.mxu0 0
        %1251 = vmatpush.bf16.msra.mxu0 0
        %1252 = vmatpush.bf16.msra.mxu0 0
        %1253 = vmatpush.bf16.msra.mxu0 0
        %1254 = vmatpush.bf16.msra.mxu0 0
        %1255 = vmatpush.bf16.msra.mxu0 %v1243
        %1256 = vmatmul.bf16.gmra.mxu0 %v1246
        %v1257 = vpop.f32.mrf.mxu0
        %v1258 = vadd.f32 0.0, %v1257
        %v1259 = vpop.f32.mrf.mxu0
        %1260 = vdwg.mxu0
        %1262 = vrot.lane.b32.xlu0 %v1258, 24
        %v1263 = vpop.permute.xlu0 %1262
        %1265 = vst.msk [vmem:[#allocation2] sm:$0xff] %vm852, %v1263
        %v1266 = vld [vmem:[#allocation2] sm:$0xff]
        %v1267 = vpack.c.bf16 %v1266, %v1266
        %v1268 = vperm.slane %v1019, 0
        %v1273 = vunpack.c.l.b16 %v531
        %v1274 = vunpack.c.l.b16 %v532
        %v1275 = vunpack.c.l.b16 %v533
        %v1276 = vunpack.c.l.b16 %v534
        %v1277 = vpack.c.b16 %v1274, %v1273
        %v1278 = vpack.c.b16 %v1276, %v1275
        %v1282 = vsel %vm551, %v1267, 0
        %1284 = vmatpush.bf16.msra.mxu0 0
        %1285 = vmatpush.bf16.msra.mxu0 0
        %1286 = vmatpush.bf16.msra.mxu0 0
        %1287 = vmatpush.bf16.msra.mxu0 0
        %1288 = vmatpush.bf16.msra.mxu0 0
        %1289 = vmatpush.bf16.msra.mxu0 0
        %1290 = vmatpush.bf16.msra.mxu0 %v1278
        %1291 = vmatpush.bf16.msra.mxu0 %v1277
        %1292 = vmatmul.bf16.gmra.mxu0 %v1282
        %v1293 = vpop.f32.mrf.mxu0
        %v1294 = vadd.f32 %v1268, %v1293
        %v1295 = vpop.f32.mrf.mxu0
        %1296 = vdwg.mxu0
        %v1297 = vadd.f32 %v920, %v1294
        %v1298 = vsel %vm551, %v1297, 0.0
        %1299 = vadd.xlane.f32.xlu0 %v1298
        %v1300 = vpop.xlane.xlu0 %1299
        %v1301 = vmul.f32 %v1300, %v895
        %v1302 = vsub.f32 %v1297, %v1301
        %v1303 = vmul.f32 %v1302, %v1302
        %v1304 = vsel %vm551, %v1303, 0.0
        %1305 = vadd.xlane.f32.xlu0 %v1304
        %v1306 = vpop.xlane.xlu0 %1305
        %v1307 = vmul.f32 %v1306, %v895
        %v1308 = vadd.f32 %v1307, 1e-05
        %v1309 = vrsqrt.pop %v1308
        %v1310 = vmul.f32 %v1309, %v1308
        %v1311 = vmul.f32 %v1310, %v1309
        %v1312 = vmul.f32 0.5, %v1311
        %v1313 = vsub.f32 1.5, %v1312
        %v1314 = vmul.f32 %v1309, %v1313
        %vm1315 = vweird.f32 %v1308
        %vm1316 = vweird.f32 %v1309
        %vm1317 = vmor %vm1315, %vm1316
        %v1318 = vsel %vm1317, %v1309, %v1314
        %v1319 = vmul.f32 %v1302, %v1318
        %v1320 = vld [vmem:[#allocation12 + $0xb] sm:$0x1]
        %v1321 = vperm.slane %v1320, 0
        %v1322 = vmul.f32 %v1319, %v1321
        %v1323 = vld [vmem:[#allocation12 + $0xc] sm:$0x1]
        %v1324 = vperm.slane %v1323, 0
        %v1325 = vadd.f32 %v1322, %v1324
        %v1326 = vpack.c.bf16 %v1325, %v1325
        %v1327 = vld [vmem:[#allocation11] sm:$0xf]
        %v1328 = vld [vmem:[#allocation11 + $0x4] sm:$0xf]
        %v1329 = vld [vmem:[#allocation11 + $0x8] sm:$0xf]
        %v1330 = vld [vmem:[#allocation11 + $0xc] sm:$0xf]
        %v1331 = vld [vmem:[#allocation12 + $0x7] sm:$0x1]
        %v1332 = vperm.slane %v1331, 0
        %v1337 = vunpack.c.l.b16 %v1327
        %v1338 = vunpack.c.l.b16 %v1328
        %v1339 = vunpack.c.l.b16 %v1329
        %v1340 = vunpack.c.l.b16 %v1330
        %v1341 = vpack.c.b16 %v1338, %v1337
        %v1342 = vpack.c.b16 %v1340, %v1339
        %v1346 = vsel %vm551, %v1326, 0
        %1348 = vmatpush.bf16.msra.mxu0 0
        %1349 = vmatpush.bf16.msra.mxu0 0
        %1350 = vmatpush.bf16.msra.mxu0 0
        %1351 = vmatpush.bf16.msra.mxu0 0
        %1352 = vmatpush.bf16.msra.mxu0 0
        %1353 = vmatpush.bf16.msra.mxu0 0
        %1354 = vmatpush.bf16.msra.mxu0 %v1342
        %1355 = vmatpush.bf16.msra.mxu0 %v1341
        %1356 = vmatmul.bf16.gmra.mxu0 %v1346
        %v1357 = vpop.f32.mrf.mxu0
        %v1358 = vadd.f32 %v1332, %v1357
        %v1359 = vpop.f32.mrf.mxu0
        %1360 = vdwg.mxu0
        %v1361 = vmul.f32 %v1358, 0.5
        %v1362 = vmul.f32 %v1358, 0.70710677
        %v1363 = vmul.f32 %v1362, %v1362
        %v1364 = vmin.f32 16.0, %v1363
        %v1365 = vmul.f32 %v1364, 2.1237322e-06
        %v1366 = vadd.f32 %v1365, 0.00028619796
        %v1367 = vmul.f32 %v1364, %v1366
        %v1368 = vadd.f32 %v1367, 0.0036580483
        %v1369 = vmul.f32 %v1364, %v1368
        %v1370 = vadd.f32 %v1369, 0.05243302
        %v1371 = vmul.f32 %v1364, %v1370
        %v1372 = vadd.f32 %v1371, 0.18741608
        %v1373 = vmul.f32 %v1364, %v1372
        %v1374 = vadd.f32 %v1373, 1.1283791
        %v1375 = vmul.f32 %v1362, %v1374
        %v1376 = vmul.f32 %v1364, 3.8918573e-05
        %v1377 = vadd.f32 %v1376, 0.001143296
        %v1378 = vmul.f32 %v1364, %v1377
        %v1379 = vadd.f32 %v1378, 0.014752088
        %v1380 = vmul.f32 %v1364, %v1379
        %v1381 = vadd.f32 %v1380, 0.112945676
        %v1382 = vmul.f32 %v1364, %v1381
        %v1383 = vadd.f32 %v1382, 0.4994258
        %v1384 = vmul.f32 %v1364, %v1383
        %v1385 = vadd.f32 %v1384, 1.0
        %v1386 = vrcp.pop %v1385
        %v1387 = vmul.f32 %v1385, %v1386
        %v1388 = vsub.f32 1.0, %v1387
        %v1389 = vmul.f32 %v1386, %v1388
        %v1390 = vadd.f32 %v1386, %v1389
        %vm1391 = vweird.f32 %v1385
        %vm1392 = vweird.f32 %v1386
        %vm1393 = vmor %vm1391, %vm1392
        %v1394 = vsel %vm1393, %v1386, %v1390
        %v1395 = vand.u32 2147483647, %v1385
        %vm1396 = vcmp.eq.f32.partialorder %v1395, 8.507059e+37
        %v1397 = vand.u32 %v1385, 2147483648
        %v1398 = vor.u32 1.1754944e-38, %v1397
        %v1399 = vsel %vm1396, %v1398, %v1394
        %v1400 = vmul.f32 %v1375, %v1399
        %v1401 = vmin.f32 %v1400, 1.0
        %v1402 = vmax.f32 %v1401, -1.0
        %v1403 = vadd.f32 %v1402, 1.0
        %v1404 = vmul.f32 %v1361, %v1403
        %v1405 = vpack.c.bf16 %v1404, %v1404
        %v1406 = vld [vmem:[%s7] sm:$0xf]
        %v1407 = vld [vmem:[%s7 + $0x4] sm:$0xf]
        %v1408 = vld [vmem:[%s7 + $0x8] sm:$0xf]
        %v1409 = vld [vmem:[%s7 + $0xc] sm:$0xf]
        %v1410 = vld [vmem:[%s7 + $0x10] sm:$0xf]
        %v1411 = vld [vmem:[%s7 + $0x14] sm:$0xf]
        %v1412 = vld [vmem:[%s7 + $0x18] sm:$0xf]
        %v1413 = vld [vmem:[%s7 + $0x1c] sm:$0xf]
        %v1414 = vld [vmem:[#allocation12 + $0x8] sm:$0x1]
        %v1415 = vperm.slane %v1414, 0
        %v1424 = vunpack.c.l.b16 %v1406
        %v1425 = vunpack.c.l.b16 %v1407
        %v1426 = vunpack.c.l.b16 %v1408
        %v1427 = vunpack.c.l.b16 %v1409
        %v1428 = vunpack.c.l.b16 %v1410
        %v1429 = vunpack.c.l.b16 %v1411
        %v1430 = vunpack.c.l.b16 %v1412
        %v1431 = vunpack.c.l.b16 %v1413
        %v1432 = vpack.c.b16 %v1425, %v1424
        %v1433 = vpack.c.b16 %v1427, %v1426
        %v1434 = vpack.c.b16 %v1429, %v1428
        %v1435 = vpack.c.b16 %v1431, %v1430
        %vm1440 = vcmask 523264
        %v1442 = vsel %vm1440, %v1405, 0
        %1444 = vmatpush.bf16.msra.mxu0 0
        %1445 = vmatpush.bf16.msra.mxu0 0
        %1446 = vmatpush.bf16.msra.mxu0 0
        %1447 = vmatpush.bf16.msra.mxu0 0
        %1448 = vmatpush.bf16.msra.mxu0 %v1435
        %1449 = vmatpush.bf16.msra.mxu0 %v1434
        %1450 = vmatpush.bf16.msra.mxu0 %v1433
        %1451 = vmatpush.bf16.msra.mxu0 %v1432
        %1452 = vmatmul.bf16.gmra.mxu0 %v1442
        %v1453 = vpop.f32.mrf.mxu0
        %v1454 = vadd.f32 %v1415, %v1453
        %v1455 = vpop.f32.mrf.mxu0
        %1456 = vdwg.mxu0
        %v1457 = vadd.f32 %v1325, %v1454
        %v1458 = vsel %vm551, %v1457, 0.0
        %1459 = vadd.xlane.f32.xlu0 %v1458
        %v1460 = vpop.xlane.xlu0 %1459
        %v1461 = vmul.f32 %v1460, %v895
        %v1462 = vsub.f32 %v1457, %v1461
        %v1463 = vmul.f32 %v1462, %v1462
        %v1464 = vsel %vm551, %v1463, 0.0
        %1465 = vadd.xlane.f32.xlu0 %v1464
        %v1466 = vpop.xlane.xlu0 %1465
        %v1467 = vmul.f32 %v1466, %v895
        %v1468 = vadd.f32 %v1467, 1e-05
        %v1469 = vrsqrt.pop %v1468
        %v1470 = vmul.f32 %v1469, %v1468
        %v1471 = vmul.f32 %v1470, %v1469
        %v1472 = vmul.f32 0.5, %v1471
        %v1473 = vsub.f32 1.5, %v1472
        %v1474 = vmul.f32 %v1469, %v1473
        %vm1475 = vweird.f32 %v1468
        %vm1476 = vweird.f32 %v1469
        %vm1477 = vmor %vm1475, %vm1476
        %v1478 = vsel %vm1477, %v1469, %v1474
        %v1479 = vmul.f32 %v1462, %v1478
        %v1480 = vld [vmem:[#allocation12 + $0xd] sm:$0x1]
        %v1481 = vperm.slane %v1480, 0
        %v1482 = vmul.f32 %v1479, %v1481
        %v1483 = vld [vmem:[#allocation12 + $0xe] sm:$0x1]
        %v1484 = vperm.slane %v1483, 0
        %v1485 = vadd.f32 %v1482, %v1484
        %1486 = vst.msk [vmem:[%s485] sm:$0xff] %vm551, %v1485
        %s1487 = sand.u32 %s248, 1
        %s1488 = scalar_lea.sflag [#allocation5], %s1487
        %s1489 = sand.u32 %s248, 1
        %s1490 = smul.addr %s1489, 8
        %s1491 = scalar_lea.vmem [#allocation14], %s1490
        // Predicated region
        $region81: #{tpu_custom_call.1} parent=55 // pred_check
          %p1492 = pneg %p258
        $region82: #{tpu_custom_call.1} parent=55 // pred_check_branch
          %1494 = sbr.rel (%p1492) target = $region84
        $region83: #{tpu_custom_call.1} parent=55 // pred_region
          %1496 = vsyncadd %s1488, 0
          %s1497 = smul.addr %s31, 8
          %s1498 = scalar_lea.hbm %s9, %s1497
          %s1500 = sshll.u32 %s1491, 4
          %s1501 = int_to_ptr.vmem [resolvable:$true] %s1500
          %s1502 = sshll.u32 %s1498, 4
          %s1503 = int_to_ptr.hbm [resolvable:$true] %s1502
          %1505 = dma.vmem_to_hbm [thread:$0]  %s1501, 128, %s1503, %s1488
        $region84: #{tpu_custom_call.1} parent=55 // pred_fallthru
          _
      $region56: #{tpu_custom_call.1} parent=5 // pred_fallthru
        _
      %p1506 = scmp.le.s32.totalorder 2, %s26
      // Predicated region
      $region85: #{tpu_custom_call.1} parent=5 // pred_check
        %p1507 = pneg %p1506
      $region86: #{tpu_custom_call.1} parent=5 // pred_check_branch
        %1509 = sbr.rel (%p1507) target = $region88
      $region87: #{tpu_custom_call.1} parent=5 // pred_region
        %s1510 = ssub.s32 %s26, 2
        // Predicated region
        $region89: #{tpu_custom_call.1} parent=87 // pred_check
          %p1511 = pneg %p264
        $region90: #{tpu_custom_call.1} parent=87 // pred_check_branch
          %1513 = sbr.rel (%p1511) target = $region92
        $region91: #{tpu_custom_call.1} parent=87 // pred_region
          %s1514 = sand.u32 %s249, 1
          %s1515 = scalar_lea.sflag [#allocation5], %s1514
          %s1516 = sand.u32 %s249, 1
          %s1517 = smul.addr %s1516, 8
          %s1518 = scalar_lea.vmem [#allocation14], %s1517
          %1520 = dma.done %s1515, 128
        $region92: #{tpu_custom_call.1} parent=87 // pred_fallthru
          _
      $region88: #{tpu_custom_call.1} parent=5 // pred_fallthru
        _
    $region6: #{tpu_custom_call.1} parent=1 // loop_footer
      %s30 = sadd.s32 1, %s26
    $region7: #{tpu_custom_call.1} parent=1 // loop_footer_branch
      %25 = sbr.rel target = $region3
    $region8: #{tpu_custom_call.1} parent=1 // loop_exit
      _
    %1521 = vsyncpa [#allocation4], 1
    %s1522 = scalar_lea.sflag [#allocation4], 1
    %1523 = vsyncpa %s1522, 1
    %1524 = vsyncpa [#allocation7], 1
    %s1525 = scalar_lea.sflag [#allocation7], 1
    %1526 = vsyncpa %s1525, 1
    %1527 = vsyncpa [#allocation10], 1
    %1528 = vsyncpa [#allocation13], 1
    %1529 = vsyncpa [#allocation5], 1
    %s1530 = scalar_lea.sflag [#allocation5], 1
    %1531 = vsyncpa %s1530, 1

</llo_original>
